<compile_context>
chip_gen: v6e
topology: v6e:2x2x1
jax: 0.10.0
libtpu: 0.0.40
codegen_flags: <defaults>
</compile_context>

<pallas_src>
import functools
import math

import jax
import jax.numpy as jnp
from jax import lax
from jax.experimental import pallas as pl
from jax.experimental.pallas import tpu as pltpu

_MB = 1024 * 1024


# --------------------------------------------------------------------------
# Tiling / VMEM helpers
# --------------------------------------------------------------------------
def _pick_tile(dim, target, align):
    """Largest multiple of `align` that divides `dim` and is <= target.

    Falls back to the full dimension (always a legal block) only when no
    aligned divisor exists.
    TODO(synk): pad + pl.cdiv grid with a masked epilogue for irregular dims.
    """
    t = min(dim, target)
    t -= t % align
    while t >= align:
        if dim % t == 0:
            return t
        t -= align
    return dim


def _vmem_limit(bytes_needed):
    """Explicit scoped-VMEM budget: >= default 32 MiB, <= v7x physical 64 MiB."""
    return int(min(64 * _MB, max(32 * _MB, 2 * bytes_needed)))


# --------------------------------------------------------------------------
# Linear:  y = x @ W + b       (x: (M, K), W: (K, N), b: (N,))
# --------------------------------------------------------------------------
def _linear_kernel(x_ref, w_ref, b_ref, o_ref, acc_ref):
    @pl.when(pl.program_id(2) == 0)
    def _():
        acc_ref[...] = jnp.zeros_like(acc_ref)

    acc_ref[...] += jnp.dot(
        x_ref[...], w_ref[...], preferred_element_type=jnp.float32
    )

    @pl.when(pl.program_id(2) == pl.num_programs(2) - 1)
    def _():
        o_ref[...] = (acc_ref[...] + b_ref[...].astype(jnp.float32)).astype(
            o_ref.dtype
        )


def linear(x, w, b=None, *, tm=512, tn=512, tk=512):
    """y = x @ w + b using a tiled Pallas MXU matmul kernel."""
    M, K = x.shape
    K2, N = w.shape
    assert K == K2
    if b is None:
        b = jnp.zeros((N,), dtype=jnp.float32)
    b2 = b.reshape(1, N).astype(jnp.float32)

    tm = _pick_tile(M, tm, 8)
    tn = _pick_tile(N, tn, 128)
    tk = _pick_tile(K, tk, 128)
    grid = (M // tm, N // tn, K // tk)

    isz = x.dtype.itemsize
    vmem = (2 * (tm * tk + tk * tn) * isz      # double-buffered input blocks
            + 2 * tn * 4                       # bias block
            + 2 * tm * tn * isz                # output block
            + tm * tn * 4)                     # f32 accumulator scratch

    return pl.pallas_call(
        _linear_kernel,
        out_shape=jax.ShapeDtypeStruct((M, N), x.dtype),
        grid_spec=pltpu.PrefetchScalarGridSpec(
            num_scalar_prefetch=0,
            grid=grid,
            in_specs=[
                pl.BlockSpec((tm, tk), lambda i, j, k: (i, k)),
                pl.BlockSpec((tk, tn), lambda i, j, k: (k, j)),
                pl.BlockSpec((1, tn), lambda i, j, k: (0, j)),
            ],
            out_specs=pl.BlockSpec((tm, tn), lambda i, j, k: (i, j)),
            scratch_shapes=[pltpu.VMEM((tm, tn), jnp.float32)],
        ),
        compiler_params=pltpu.CompilerParams(
            dimension_semantics=("parallel", "parallel", "arbitrary"),
            vmem_limit_bytes=_vmem_limit(vmem),
        ),
    )(x, w, b2)


# --------------------------------------------------------------------------
# Scaled dot-product attention.
#   grid = (B, Sq/tq); one step = one (tq, D) query tile x full (Sk, D) K/V.
#   All heads are processed inside the step (lane-dense (tq, D) ctx store, no
#   head transposes in HBM).  Returns (ctx (B,Sq,D), weights (B,H,Sq,Sk)).
# --------------------------------------------------------------------------
def _attention_kernel(q_ref, k_ref, v_ref, o_ref, w_ref, *, num_heads, scale_inv):
    # q_ref: (1, tq, D)   k_ref / v_ref: (1, Sk, D)
    # o_ref: (1, tq, D)   w_ref: (1, H, tq, Sk)
    D = q_ref.shape[-1]
    d_k = D // num_heads

    # Fold the 1/sqrt(d_k) scale into the small Q tile (native MXU dtype).
    q = (q_ref[0] * scale_inv).astype(q_ref.dtype)      # (tq, D)
    k = k_ref[0]                                         # (Sk, D)
    v = v_ref[0]                                         # (Sk, D)

    ctx_parts = []
    for h in range(num_heads):
        sl = slice(h * d_k, (h + 1) * d_k)
        # scores_h = (Q_h * scale) @ K_h^T  -> f32 accumulate, no explicit .T
        s = lax.dot_general(
            q[:, sl], k[:, sl],
            dimension_numbers=(((1,), (1,)), ((), ())),
            preferred_element_type=jnp.float32,
        )                                                # (tq, Sk)

        # Numerically stable softmax in f32; reciprocal on the EUP.
        m = jnp.max(s, axis=-1, keepdims=True)
        p = jnp.exp(s - m)
        denom = jnp.sum(p, axis=-1, keepdims=True)
        attn = p * pl.reciprocal(denom, approx=True)

        w_ref[0, h, :, :] = attn.astype(w_ref.dtype)
        ctx_parts.append(
            jnp.dot(attn.astype(v.dtype), v[:, sl],
                    preferred_element_type=jnp.float32)  # (tq, d_k)
        )

    # One lane-dense (tq, D) store for the merged-head context.
    o_ref[0] = jnp.concatenate(ctx_parts, axis=-1).astype(o_ref.dtype)


def _mha_attention(q_arr, k_arr, v_arr, *, B, Sq, Sk, D, num_heads, scale,
                   q_col, k_col, v_col):
    """Attention over all heads.

    q_arr: (B, Sq, Wq) with Q features in column-block `q_col` (width D);
    k_arr / v_arr: (B, Sk, Wk) analogously.  For the packed self-attention
    path all three are the SAME (B, S, 3D) array with q/k/v_col = 0/1/2; for
    the general path they are separate (B, S, D) arrays with col 0.
    """
    dtype = q_arr.dtype
    H = num_heads
    isz = dtype.itemsize

    # Bound the double-buffered weights writeback block, then pick the Sq tile.
    tq_budget = max(8, (8 * _MB) // max(1, 2 * H * Sk * isz))
    tq = _pick_tile(Sq, min(512, tq_budget), 8)

    kernel = functools.partial(_attention_kernel, num_heads=H,
                               scale_inv=1.0 / scale)

    vmem = (2 * isz * (2 * tq * D + 2 * Sk * D + H * tq * Sk)  # blocks (2x buf)
            + 2 * 4 * tq * Sk)                                 # f32 temporaries

    grid = (B, Sq // tq)
    ctx, weights = pl.pallas_call(
        kernel,
        out_shape=(
            jax.ShapeDtypeStruct((B, Sq, D), dtype),
            jax.ShapeDtypeStruct((B, H, Sq, Sk), dtype),
        ),
        grid_spec=pltpu.PrefetchScalarGridSpec(
            num_scalar_prefetch=0,
            grid=grid,
            in_specs=[
                pl.BlockSpec((1, tq, D), lambda b, i: (b, i, q_col)),
                # K/V blocks ignore the Sq-tile index -> stay resident in VMEM.
                pl.BlockSpec((1, Sk, D), lambda b, i: (b, 0, k_col)),
                pl.BlockSpec((1, Sk, D), lambda b, i: (b, 0, v_col)),
            ],
            out_specs=[
                pl.BlockSpec((1, tq, D), lambda b, i: (b, i, 0)),
                pl.BlockSpec((1, H, tq, Sk), lambda b, i: (b, 0, i, 0)),
            ],
        ),
        compiler_params=pltpu.CompilerParams(
            dimension_semantics=("parallel", "parallel"),
            vmem_limit_bytes=_vmem_limit(vmem),
        ),
    )(q_arr, k_arr, v_arr)
    return ctx, weights


# --------------------------------------------------------------------------
# Full MultiHeadAttention forward (eval mode: dropout = identity, mask = None)
# --------------------------------------------------------------------------
def multi_head_attention(query, key, value, params, *, num_heads):
    B, Sq, D = query.shape
    Sk = key.shape[1]
    assert D % num_heads == 0
    d_k = D // num_heads
    scale = math.sqrt(d_k)

    self_attn = (query is key) and (key is value)

    if self_attn and D % 128 == 0:
        # Fused QKV projection: x streamed from HBM once, one kernel launch,
        # and the attention BlockSpecs slice Q/K/V out of the packed output
        # directly (no wrapper-level slicing/transposes).
        w_qkv = jnp.concatenate(
            [params["w_q"], params["w_k"], params["w_v"]], axis=1)
        qkv = linear(query.reshape(B * Sq, D), w_qkv).reshape(B, Sq, 3 * D)
        ctx, weights = _mha_attention(
            qkv, qkv, qkv, B=B, Sq=Sq, Sk=Sk, D=D, num_heads=num_heads,
            scale=scale, q_col=0, k_col=1, v_col=2)
    else:
        Q = linear(query.reshape(B * Sq, D), params["w_q"]).reshape(B, Sq, D)
        K = linear(key.reshape(B * Sk, D), params["w_k"]).reshape(B, Sk, D)
        V = linear(value.reshape(B * Sk, D), params["w_v"]).reshape(B, Sk, D)
        ctx, weights = _mha_attention(
            Q, K, V, B=B, Sq=Sq, Sk=Sk, D=D, num_heads=num_heads,
            scale=scale, q_col=0, k_col=0, v_col=0)

    # ctx is already (B, Sq, D) with heads merged along D -> no transpose.
    out = linear(ctx.reshape(B * Sq, D), params["w_o"],
                 params["b_o"]).reshape(B, Sq, D)
    return out, weights


# --------------------------------------------------------------------------
# Pure-JAX reference (mirrors the PyTorch module in eval mode, mask=None).
# --------------------------------------------------------------------------
def _reference_mha(query, key, value, params, *, num_heads):
    B, Sq, D = query.shape
    Sk = key.shape[1]
    d_k = D // num_heads
    Q = (query @ params["w_q"]).reshape(B, Sq, num_heads, d_k).transpose(0, 2, 1, 3)
    K = (key @ params["w_k"]).reshape(B, Sk, num_heads, d_k).transpose(0, 2, 1, 3)
    V = (value @ params["w_v"]).reshape(B, Sk, num_heads, d_k).transpose(0, 2, 1, 3)
    scores = jnp.einsum("bhqd,bhkd->bhqk", Q, K) / math.sqrt(d_k)
    weights = jax.nn.softmax(scores, axis=-1)
    ctx = jnp.einsum("bhqk,bhkd->bhqd", weights, V)
    ctx = ctx.transpose(0, 2, 1, 3).reshape(B, Sq, D)
    out = ctx @ params["w_o"] + params["b_o"]
    return out, weights


if __name__ == "__main__":
    batch, seq, d_model, num_heads = 2, 128, 256, 2  # d_k = 128 (MXU-friendly)

    root = jax.random.PRNGKey(0)
    ks = jax.random.split(root, 8)
    x = jax.random.normal(ks[0], (batch, seq, d_model), dtype=jnp.float32)

    wscale = 1.0 / math.sqrt(d_model)
    params = {
        "w_q": jax.random.normal(ks[3], (d_model, d_model), jnp.float32) * wscale,
        "w_k": jax.random.normal(ks[4], (d_model, d_model), jnp.float32) * wscale,
        "w_v": jax.random.normal(ks[5], (d_model, d_model), jnp.float32) * wscale,
        "w_o": jax.random.normal(ks[6], (d_model, d_model), jnp.float32) * wscale,
        "b_o": jax.random.normal(ks[7], (d_model,), jnp.float32) * wscale,
    }

    # ---- self-attention (packed fused-QKV path) ----
    out, weights = multi_head_attention(x, x, x, params, num_heads=num_heads)
    out = jax.block_until_ready(out)
    weights = jax.block_until_ready(weights)

    ref_out, ref_w = _reference_mha(x, x, x, params, num_heads=num_heads)

    assert out.shape == (batch, seq, d_model)
    assert weights.shape == (batch, num_heads, seq, seq)
    # Tolerances loosened slightly for the EUP approximate reciprocal.
    assert jnp.allclose(out, ref_out, atol=5e-3, rtol=5e-3), "output mismatch (self)"
    assert jnp.allclose(weights, ref_w, atol=5e-3, rtol=5e-3), "weights mismatch (self)"

    # ---- cross-attention (general path, separate Q/K/V projections) ----
    seq_k = 256
    q_in = jax.random.normal(ks[1], (batch, seq, d_model), dtype=jnp.float32)
    kv_in = jax.random.normal(ks[2], (batch, seq_k, d_model), dtype=jnp.float32)
    out2, w2 = multi_head_attention(q_in, kv_in, kv_in, params, num_heads=num_heads)
    out2 = jax.block_until_ready(out2)
    w2 = jax.block_until_ready(w2)
    ref_out2, ref_w2 = _reference_mha(q_in, kv_in, kv_in, params, num_heads=num_heads)

    assert out2.shape == (batch, seq, d_model)
    assert w2.shape == (batch, num_heads, seq, seq_k)
    assert jnp.allclose(out2, ref_out2, atol=5e-3, rtol=5e-3), "output mismatch (cross)"
    assert jnp.allclose(w2, ref_w2, atol=5e-3, rtol=5e-3), "weights mismatch (cross)"

    print("KERNEL_OK")
</pallas_src>

<mosaic_0001>
module attributes {stable_mosaic.version = 11 : i64} {
  func.func @_linear_kernel(%arg0: i32, %arg1: i32, %arg2: i32, %arg3: memref<256x256xf32, #tpu.memory_space<vmem>>, %arg4: memref<256x384xf32, #tpu.memory_space<vmem>>, %arg5: memref<1x384xf32, #tpu.memory_space<vmem>>, %arg6: memref<256x384xf32, #tpu.memory_space<vmem>>, %arg7: memref<256x384xf32, #tpu.memory_space<vmem>>) attributes {dimension_semantics = [#tpu.dimension_semantics<parallel>, #tpu.dimension_semantics<parallel>, #tpu.dimension_semantics<arbitrary>], iteration_bounds = array<i64: 1, 2, 1>, scalar_prefetch = 0 : i64, scratch_operands = 1 : i64, tpu.core_type = #tpu.core_type<tc>, window_params = [{transform_indices = @transform_0, window_bounds = array<i64: 256, 256>}, {transform_indices = @transform_1, window_bounds = array<i64: 256, 384>}, {transform_indices = @transform_2, window_bounds = array<i64: 1, 384>}, {transform_indices = @transform_3, window_bounds = array<i64: 256, 384>}]} {
    %c0_i32 = arith.constant 0 : i32
    %0 = arith.cmpi eq, %arg2, %c0_i32 : i32
    %1 = arith.extui %0 : i1 to i32
    %c0_i32_0 = arith.constant 0 : i32
    %2 = arith.cmpi ne, %1, %c0_i32_0 : i32
    scf.if %2 {
      %cst_10 = arith.constant 0.000000e+00 : f32
      %12 = vector.broadcast %cst_10 : f32 to vector<256x384xf32>
      %c0_11 = arith.constant 0 : index
      %c0_12 = arith.constant 0 : index
      %13 = vector.load %arg7[%c0_11, %c0_12] : memref<256x384xf32, #tpu.memory_space<vmem>>, vector<256x384xf32>
      tpu.vector_store %arg7[%c0_11, %c0_12], %12 {strides = array<i32>} : memref<256x384xf32, #tpu.memory_space<vmem>>, vector<256x384xf32>,
    } else {
    }
    %c0 = arith.constant 0 : index
    %c0_1 = arith.constant 0 : index
    %3 = vector.load %arg7[%c0, %c0_1] : memref<256x384xf32, #tpu.memory_space<vmem>>, vector<256x384xf32>
    %c0_2 = arith.constant 0 : index
    %c0_3 = arith.constant 0 : index
    %4 = vector.load %arg3[%c0_2, %c0_3] : memref<256x256xf32, #tpu.memory_space<vmem>>, vector<256x256xf32>
    %c0_4 = arith.constant 0 : index
    %c0_5 = arith.constant 0 : index
    %5 = vector.load %arg4[%c0_4, %c0_5] : memref<256x384xf32, #tpu.memory_space<vmem>>, vector<256x384xf32>
    %cst = arith.constant dense<0.000000e+00> : vector<256x384xf32>
    %6 = tpu.matmul %4, %5, %cst {dimension_numbers = #tpu.dot_dimension_numbers<[1], [0], [0], [1], [0, 0, 1, 1], [], []>} : vector<256x256xf32>, vector<256x384xf32>, vector<256x384xf32> -> vector<256x384xf32>
    %7 = arith.addf %3, %6 : vector<256x384xf32>
    %c0_6 = arith.constant 0 : index
    %c0_7 = arith.constant 0 : index
    %8 = vector.load %arg7[%c0_6, %c0_7] : memref<256x384xf32, #tpu.memory_space<vmem>>, vector<256x384xf32>
    tpu.vector_store %arg7[%c0_6, %c0_7], %7 {strides = array<i32>} : memref<256x384xf32, #tpu.memory_space<vmem>>, vector<256x384xf32>,
    %c0_i32_8 = arith.constant 0 : i32
    %9 = arith.cmpi eq, %arg2, %c0_i32_8 : i32
    %10 = arith.extui %9 : i1 to i32
    %c0_i32_9 = arith.constant 0 : i32
    %11 = arith.cmpi ne, %10, %c0_i32_9 : i32
    scf.if %11 {
      %c0_10 = arith.constant 0 : index
      %c0_11 = arith.constant 0 : index
      %12 = vector.load %arg7[%c0_10, %c0_11] : memref<256x384xf32, #tpu.memory_space<vmem>>, vector<256x384xf32>
      %c0_12 = arith.constant 0 : index
      %c0_13 = arith.constant 0 : index
      %13 = vector.load %arg5[%c0_12, %c0_13] : memref<1x384xf32, #tpu.memory_space<vmem>>, vector<1x384xf32>
      %14 = vector.broadcast %13 : vector<1x384xf32> to vector<256x384xf32>
      %15 = arith.addf %12, %14 : vector<256x384xf32>
      %c0_14 = arith.constant 0 : index
      %c0_15 = arith.constant 0 : index
      %16 = vector.load %arg6[%c0_14, %c0_15] : memref<256x384xf32, #tpu.memory_space<vmem>>, vector<256x384xf32>
      tpu.vector_store %arg6[%c0_14, %c0_15], %15 {strides = array<i32>} : memref<256x384xf32, #tpu.memory_space<vmem>>, vector<256x384xf32>,
    } else {
    }
    return
  }
  func.func @transform_0(%arg0: i32, %arg1: i32, %arg2: i32) -> (i32, i32) {
    %c0_i32 = arith.constant 0 : i32
    return %arg0, %arg2 : i32, i32
  }
  func.func @transform_1(%arg0: i32, %arg1: i32, %arg2: i32) -> (i32, i32) {
    %c0_i32 = arith.constant 0 : i32
    return %arg2, %arg1 : i32, i32
  }
  func.func @transform_2(%arg0: i32, %arg1: i32, %arg2: i32) -> (i32, i32) {
    %c0_i32 = arith.constant 0 : i32
    %c0_i32_0 = arith.constant 0 : i32
    return %c0_i32, %arg1 : i32, i32
  }
  func.func @transform_3(%arg0: i32, %arg1: i32, %arg2: i32) -> (i32, i32) {
    %c0_i32 = arith.constant 0 : i32
    return %arg0, %arg1 : i32, i32
  }
}

</mosaic_0001>

<llo_original>
// kernel: tpu_custom_call.1
$region0: #{tpu_custom_call.1}
  #allocation0 [shape = 'u32[]', space=smem, size = 0x4, offset = 0x4, fixed_abs, tag = 'smem constant byte address 0x4 - core index']
  #allocation1 [shape = 'u32[144,128]{1,0:T(1,128)}', space=vmem, size = 0x12000, scoped, tag = 'internal scratch']
  #allocation2 [shape = 'f32[256,384]{1,0:T(8,128)}', space=vmem, size = 0x60000, scoped, tag = 'scratch operand']
  %s0 = inlined_call_operand.hbm [shape: f32[256,256], index: 0, kind: input, shape index: {}]
  %s1 = inlined_call_operand.hbm [shape: f32[256,768], index: 1, kind: input, shape index: {}]
  %s2 = inlined_call_operand.hbm [shape: f32[1,768], index: 2, kind: input, shape index: {}]
  %s3 = inlined_call_operand.hbm [shape: f32[256,768], index: 3, kind: output, shape index: {}]
  %s4 = sld [smem:[#allocation0]]
  $region65: #{tpu_custom_call.1} parent=0
    _
  %s6 = ssub.s32 1, %s4
  %s7 = scalar_select 0, %s6, %s4
  $region1: #{tpu_custom_call.1} parent=0
    #allocation3 [shape = 'u8[262144]{0}', space=vmem, size = 0x40000, scoped, tag = 'input window, operand 0, single buffered']
    #allocation4 [shape = 's32[2]{0}', space=sflag, size = 0x8, scoped, tag = 'scoped memory for tpu_custom_call.1']
    #allocation5 [shape = 's32[2]{0}', space=sflag, size = 0x8, scoped, tag = 'scoped memory for tpu_custom_call.1']
    #allocation6 [shape = 'u8[786432]{0}', space=vmem, size = 0xc0000, scoped, tag = 'input window, operand 1']
    #allocation7 [shape = 's32[2]{0}', space=sflag, size = 0x8, scoped, tag = 'scoped memory for tpu_custom_call.1']
    #allocation8 [shape = 'u8[3072]{0}', space=vmem, size = 0xc00, scoped, tag = 'input window, operand 2']
    #allocation9 [shape = 'u8[786432]{0}', space=vmem, size = 0xc0000, scoped, tag = 'output window, operand 0']
    %8 = vsyncpa [#allocation4], 0
    %9 = vsyncpa [#allocation7], 0
    %s10 = scalar_lea.sflag [#allocation7], 1
    %11 = vsyncpa %s10, 0
    %12 = vsyncpa [#allocation5], 0
    %s13 = scalar_lea.sflag [#allocation5], 1
    %14 = vsyncpa %s13, 0
    loop: start=0, step=1, limit=4
    $region2: #{tpu_custom_call.1} parent=1 // loop_pre_header
      _
    $region3: #{tpu_custom_call.1} parent=1 // loop_header
      %s16 = sphi 0, %s20
      %p17 = scmp.ge.s32.totalorder %s16, 4
      %s23 = sphi 0, %s42
      %s24 = sphi 0, %s38
      %s25 = sphi 0, %s34
      %s26 = sphi 0, %s23
      %s27 = sphi 0, %s24
      %s28 = sphi 0, %s25
      %s29 = sphi 0, %s26
      %s30 = sphi 0, %s27
      %s31 = sphi 0, %s28
      %s47 = sphi 0, %s49
      %s50 = sphi 0, %s47
      %s51 = sphi 0, %s50
      %s67 = sphi 0, %s51
      %s75 = sphi 0, %s77
      %s78 = sphi 0, %s75
      %s79 = sphi 0, %s78
      %s95 = sphi 0, %s79
      %s101 = sphi 0, %s103
      %s104 = sphi 0, %s101
      %s105 = sphi 0, %s104
      %s121 = sphi 0, %s105
      %s129 = sphi 0, %s131
      %s132 = sphi 0, %s129
      %s133 = sphi 0, %s132
      %s149 = sphi 0, %s133
    $region4: #{tpu_custom_call.1} parent=1 // loop_header_branch
      %19 = sbr.rel (%p17) target = $region8
    $region5: #{tpu_custom_call.1} parent=1 // loop_body
      %s21 = ssub.s32 %s16, 1
      %s22 = ssub.s32 %s16, 2
      %s32 = sadd.s32 1, %s25
      %p33 = scmp.ge.s32.totalorder %s32, 1
      %s34 = scalar_select %p33, 0, %s32
      %s35 = sadd.s32 1, %s24
      %s36 = scalar_select %p33, %s35, %s24
      %p37 = scmp.ge.s32.totalorder %s36, 2
      %s38 = scalar_select %p37, 0, %s36
      %s39 = sadd.s32 1, %s23
      %s40 = scalar_select %p37, %s39, %s23
      %p41 = scmp.ge.s32.totalorder %s40, 1
      %s42 = scalar_select %p41, 0, %s40
      %s43 = ssub.s32 %s23, %s42
      %s44 = ssub.s32 %s25, %s34
      %s45 = sor.u32 %s43, %s44
      %p46 = scmp.eq.s32.totalorder %s45, 0
      %s48 = sadd.s32 %s47, 1
      %s49 = scalar_select %p46, %s47, %s48
      %p52 = pneg %p46
      %p53 = scmp.eq.s32.totalorder %s16, 1
      %p54 = por %p52, %p53
      %p55 = scmp.ne.s32.totalorder %s47, %s50
      %p56 = scmp.eq.s32.totalorder %s16, 0
      %p57 = por %p55, %p56
      %p58 = scmp.ne.s32.totalorder %s47, %s50
      %p59 = scmp.eq.s32.totalorder %s21, 1
      %p60 = por %p58, %p59
      %p61 = scmp.ne.s32.totalorder %s50, %s51
      %p62 = scmp.eq.s32.totalorder %s21, 0
      %p63 = por %p61, %p62
      %p64 = scmp.ne.s32.totalorder %s50, %s51
      %p65 = scmp.eq.s32.totalorder %s22, 1
      %p66 = por %p64, %p65
      %p68 = scmp.ne.s32.totalorder %s51, %s67
      %p69 = scmp.eq.s32.totalorder %s22, 0
      %p70 = por %p68, %p69
      %s71 = ssub.s32 %s25, %s34
      %s72 = ssub.s32 %s24, %s38
      %s73 = sor.u32 %s71, %s72
      %p74 = scmp.eq.s32.totalorder %s73, 0
      %s76 = sadd.s32 %s75, 1
      %s77 = scalar_select %p74, %s75, %s76
      %p80 = pneg %p74
      %p81 = scmp.eq.s32.totalorder %s16, 1
      %p82 = por %p80, %p81
      %p83 = scmp.ne.s32.totalorder %s75, %s78
      %p84 = scmp.eq.s32.totalorder %s16, 0
      %p85 = por %p83, %p84
      %p86 = scmp.ne.s32.totalorder %s75, %s78
      %p87 = scmp.eq.s32.totalorder %s21, 1
      %p88 = por %p86, %p87
      %p89 = scmp.ne.s32.totalorder %s78, %s79
      %p90 = scmp.eq.s32.totalorder %s21, 0
      %p91 = por %p89, %p90
      %p92 = scmp.ne.s32.totalorder %s78, %s79
      %p93 = scmp.eq.s32.totalorder %s22, 1
      %p94 = por %p92, %p93
      %p96 = scmp.ne.s32.totalorder %s79, %s95
      %p97 = scmp.eq.s32.totalorder %s22, 0
      %p98 = por %p96, %p97
      %s99 = ssub.s32 %s24, %s38
      %p100 = scmp.eq.s32.totalorder %s99, 0
      %s102 = sadd.s32 %s101, 1
      %s103 = scalar_select %p100, %s101, %s102
      %p106 = pneg %p100
      %p107 = scmp.eq.s32.totalorder %s16, 1
      %p108 = por %p106, %p107
      %p109 = scmp.ne.s32.totalorder %s101, %s104
      %p110 = scmp.eq.s32.totalorder %s16, 0
      %p111 = por %p109, %p110
      %p112 = scmp.ne.s32.totalorder %s101, %s104
      %p113 = scmp.eq.s32.totalorder %s21, 1
      %p114 = por %p112, %p113
      %p115 = scmp.ne.s32.totalorder %s104, %s105
      %p116 = scmp.eq.s32.totalorder %s21, 0
      %p117 = por %p115, %p116
      %p118 = scmp.ne.s32.totalorder %s104, %s105
      %p119 = scmp.eq.s32.totalorder %s22, 1
      %p120 = por %p118, %p119
      %p122 = scmp.ne.s32.totalorder %s105, %s121
      %p123 = scmp.eq.s32.totalorder %s22, 0
      %p124 = por %p122, %p123
      %s125 = ssub.s32 %s23, %s42
      %s126 = ssub.s32 %s24, %s38
      %s127 = sor.u32 %s125, %s126
      %p128 = scmp.eq.s32.totalorder %s127, 0
      %s130 = sadd.s32 %s129, 1
      %s131 = scalar_select %p128, %s129, %s130
      %p134 = pneg %p128
      %p135 = scmp.eq.s32.totalorder %s16, 1
      %p136 = por %p134, %p135
      %p137 = scmp.ne.s32.totalorder %s129, %s132
      %p138 = scmp.eq.s32.totalorder %s16, 0
      %p139 = por %p137, %p138
      %p140 = scmp.ne.s32.totalorder %s129, %s132
      %p141 = scmp.eq.s32.totalorder %s21, 1
      %p142 = por %p140, %p141
      %p143 = scmp.ne.s32.totalorder %s132, %s133
      %p144 = scmp.eq.s32.totalorder %s21, 0
      %p145 = por %p143, %p144
      %p146 = scmp.ne.s32.totalorder %s132, %s133
      %p147 = scmp.eq.s32.totalorder %s22, 1
      %p148 = por %p146, %p147
      %p150 = scmp.ne.s32.totalorder %s133, %s149
      %p151 = scmp.eq.s32.totalorder %s22, 0
      %p152 = por %p150, %p151
      %p153 = scmp.le.s32.totalorder 1, %s16
      %p154 = scmp.lt.s32.totalorder %s16, 3
      %p155 = pnand %p153, %p154
      %p156 = pneg %p155
      // Predicated region
      $region9: #{tpu_custom_call.1} parent=5 // pred_check
        _
      $region10: #{tpu_custom_call.1} parent=5 // pred_check_branch
        %158 = sbr.rel (%p155) target = $region12
      $region11: #{tpu_custom_call.1} parent=5 // pred_region
        %s159 = ssub.s32 %s16, 1
        // Predicated region
        $region13: #{tpu_custom_call.1} parent=11 // pred_check
          %p160 = pneg %p63
        $region14: #{tpu_custom_call.1} parent=11 // pred_check_branch
          %162 = sbr.rel (%p160) target = $region16
        $region15: #{tpu_custom_call.1} parent=11 // pred_region
          %s163 = smul.u32 32, %s26
          %s164 = smul.u32 2, %s28
          %s166 = ssub.s32 8192, 8192
          %167 = vsyncadd [#allocation4], %s166
          %s168 = smul.addr %s163, 2
          %s169 = sadd.s32 %s164, %s168
          %s170 = smul.addr %s169, 128
          %s171 = scalar_lea.hbm %s0, %s170
          %s172 = sshll.u32 [#allocation3], 4
          %s173 = int_to_ptr.vmem [resolvable:$true] %s172
          %178 = dma.hbm_to_vmem [thread:$0]  %s171, 8192, %s173, [#allocation4], 256, 256, 16
        $region16: #{tpu_custom_call.1} parent=11 // pred_fallthru
          _
      $region12: #{tpu_custom_call.1} parent=5 // pred_fallthru
        _
      %p179 = scmp.lt.s32.totalorder %s16, 2
      // Predicated region
      $region17: #{tpu_custom_call.1} parent=5 // pred_check
        %p180 = pneg %p179
      $region18: #{tpu_custom_call.1} parent=5 // pred_check_branch
        %182 = sbr.rel (%p180) target = $region20
      $region19: #{tpu_custom_call.1} parent=5 // pred_region
        // Predicated region
        $region21: #{tpu_custom_call.1} parent=19 // pred_check
          %p183 = pneg %p85
        $region22: #{tpu_custom_call.1} parent=19 // pred_check_branch
          %185 = sbr.rel (%p183) target = $region24
        $region23: #{tpu_custom_call.1} parent=19 // pred_region
          %s186 = sand.u32 %s16, 1
          %s187 = scalar_lea.sflag [#allocation7], %s186
          %s188 = sand.u32 %s75, 1
          %s189 = smul.addr %s188, 768
          %s190 = scalar_lea.vmem [#allocation6], %s189
          %s191 = smul.u32 32, %s25
          %s192 = smul.u32 3, %s24
          %s194 = ssub.s32 12288, 12288
          %195 = vsyncadd %s187, %s194
          %s196 = smul.addr %s191, 6
          %s197 = sadd.s32 %s192, %s196
          %s198 = smul.addr %s197, 128
          %s199 = scalar_lea.hbm %s1, %s198
          %s200 = sshll.u32 %s190, 4
          %s201 = int_to_ptr.vmem [resolvable:$true] %s200
          %206 = dma.hbm_to_vmem [thread:$0]  %s199, 12288, %s201, %s187, 768, 384, 24
        $region24: #{tpu_custom_call.1} parent=19 // pred_fallthru
          _
        // Predicated region
        $region25: #{tpu_custom_call.1} parent=19 // pred_check
          %p207 = pneg %p111
        $region26: #{tpu_custom_call.1} parent=19 // pred_check_branch
          %209 = sbr.rel (%p207) target = $region28
        $region27: #{tpu_custom_call.1} parent=19 // pred_region
          %s210 = sand.u32 %s16, 1
          %s211 = scalar_lea.sflag [#allocation7], %s210
          %s212 = sand.u32 %s101, 1
          %s213 = smul.addr %s212, 3
          %s214 = scalar_lea.vmem [#allocation8], %s213
          %s215 = smul.u32 3, %s24
          %s217 = ssub.s32 48, 48
          %218 = vsyncadd %s211, %s217
          %s219 = smul.addr %s215, 16
          %s220 = scalar_lea.hbm %s2, %s219
          %s222 = sshll.u32 %s214, 4
          %s223 = int_to_ptr.vmem [resolvable:$true] %s222
          %225 = dma.hbm_to_vmem [thread:$0]  %s220, 48, %s223, %s211
        $region28: #{tpu_custom_call.1} parent=19 // pred_fallthru
          _
      $region20: #{tpu_custom_call.1} parent=5 // pred_fallthru
        _
      %p226 = scmp.le.s32.totalorder 1, %s16
      %p227 = scmp.lt.s32.totalorder %s16, 3
      %p228 = pnand %p226, %p227
      %p229 = pneg %p228
      // Predicated region
      $region29: #{tpu_custom_call.1} parent=5 // pred_check
        _
      $region30: #{tpu_custom_call.1} parent=5 // pred_check_branch
        %231 = sbr.rel (%p228) target = $region32
      $region31: #{tpu_custom_call.1} parent=5 // pred_region
        %s232 = ssub.s32 %s16, 1
        // Predicated region
        $region33: #{tpu_custom_call.1} parent=31 // pred_check
          %p233 = pneg %p63
        $region34: #{tpu_custom_call.1} parent=31 // pred_check_branch
          %235 = sbr.rel (%p233) target = $region36
        $region35: #{tpu_custom_call.1} parent=31 // pred_region
          %236 = dma.done [#allocation4], 8192
        $region36: #{tpu_custom_call.1} parent=31 // pred_fallthru
          _
        %s237 = sand.u32 %s21, 1
        %s238 = scalar_lea.sflag [#allocation7], %s237
        %s239 = sand.u32 %s78, 1
        %s240 = smul.addr %s239, 768
        %s241 = scalar_lea.vmem [#allocation6], %s240
        // Predicated region
        $region37: #{tpu_custom_call.1} parent=31 // pred_check
          %p242 = pneg %p91
        $region38: #{tpu_custom_call.1} parent=31 // pred_check_branch
          %244 = sbr.rel (%p242) target = $region40
        $region39: #{tpu_custom_call.1} parent=31 // pred_region
          %245 = dma.done %s238, 12288
        $region40: #{tpu_custom_call.1} parent=31 // pred_fallthru
          _
        %s246 = sand.u32 %s21, 1
        %s247 = scalar_lea.sflag [#allocation7], %s246
        %s248 = sand.u32 %s104, 1
        %s249 = smul.addr %s248, 3
        %s250 = scalar_lea.vmem [#allocation8], %s249
        // Predicated region
        $region41: #{tpu_custom_call.1} parent=31 // pred_check
          %p251 = pneg %p117
        $region42: #{tpu_custom_call.1} parent=31 // pred_check_branch
          %253 = sbr.rel (%p251) target = $region44
        $region43: #{tpu_custom_call.1} parent=31 // pred_region
          %254 = dma.done %s247, 48
        $region44: #{tpu_custom_call.1} parent=31 // pred_fallthru
          _
        %p255 = pneg %p63
        %p256 = pneg %p60
        %s257 = sand.u32 %s21, 1
        %s258 = scalar_lea.sflag [#allocation7], %s257
        %s259 = sand.u32 %s78, 1
        %s260 = smul.addr %s259, 768
        %s261 = scalar_lea.vmem [#allocation6], %s260
        %p262 = pneg %p91
        %p263 = pneg %p88
        %s264 = sand.u32 %s21, 1
        %s265 = scalar_lea.sflag [#allocation7], %s264
        %s266 = sand.u32 %s104, 1
        %s267 = smul.addr %s266, 3
        %s268 = scalar_lea.vmem [#allocation8], %s267
        %p269 = pneg %p117
        %p270 = pneg %p114
        %p271 = pneg %p145
        %p272 = pneg %p142
        %s273 = sand.u32 %s132, 1
        %s274 = scalar_lea.sflag [#allocation5], %s273
        %s275 = sand.u32 %s132, 1
        %s276 = smul.addr %s275, 768
        %s277 = scalar_lea.vmem [#allocation9], %s276
        %s278 = smul.u32 32, %s26
        %s279 = smul.u32 2, %s28
        %s280 = smul.u32 32, %s28
        %s281 = smul.u32 3, %s27
        %s282 = smul.u32 3, %s27
        %s283 = smul.u32 32, %s26
        %s284 = smul.u32 3, %s27
        %p285 = scmp.eq.s32.totalorder %s28, 0
        // Predicated region
        $region45: #{tpu_custom_call.1} parent=31 // pred_check
          %p286 = pneg %p285
        $region46: #{tpu_custom_call.1} parent=31 // pred_check_branch
          %288 = sbr.rel (%p286) target = $region48
        $region47: #{tpu_custom_call.1} parent=31 // pred_region
          %289 = vst [vmem:[#allocation2] sm:$0xff] 0.0
          %290 = vst [vmem:[#allocation2 + $0x8] sm:$0xff] 0.0
          %291 = vst [vmem:[#allocation2 + $0x10] sm:$0xff] 0.0
          %292 = vst [vmem:[#allocation2 + $0x18] sm:$0xff] 0.0
          %293 = vst [vmem:[#allocation2 + $0x20] sm:$0xff] 0.0
          %294 = vst [vmem:[#allocation2 + $0x28] sm:$0xff] 0.0
          %295 = vst [vmem:[#allocation2 + $0x30] sm:$0xff] 0.0
          %296 = vst [vmem:[#allocation2 + $0x38] sm:$0xff] 0.0
          %297 = vst [vmem:[#allocation2 + $0x40] sm:$0xff] 0.0
          %298 = vst [vmem:[#allocation2 + $0x48] sm:$0xff] 0.0
          %299 = vst [vmem:[#allocation2 + $0x50] sm:$0xff] 0.0
          %300 = vst [vmem:[#allocation2 + $0x58] sm:$0xff] 0.0
          %301 = vst [vmem:[#allocation2 + $0x60] sm:$0xff] 0.0
          %302 = vst [vmem:[#allocation2 + $0x68] sm:$0xff] 0.0
          %303 = vst [vmem:[#allocation2 + $0x70] sm:$0xff] 0.0
          %304 = vst [vmem:[#allocation2 + $0x78] sm:$0xff] 0.0
          %305 = vst [vmem:[#allocation2 + $0x80] sm:$0xff] 0.0
          %306 = vst [vmem:[#allocation2 + $0x88] sm:$0xff] 0.0
          %307 = vst [vmem:[#allocation2 + $0x90] sm:$0xff] 0.0
          %308 = vst [vmem:[#allocation2 + $0x98] sm:$0xff] 0.0
          %309 = vst [vmem:[#allocation2 + $0xa0] sm:$0xff] 0.0
          %310 = vst [vmem:[#allocation2 + $0xa8] sm:$0xff] 0.0
          %311 = vst [vmem:[#allocation2 + $0xb0] sm:$0xff] 0.0
          %312 = vst [vmem:[#allocation2 + $0xb8] sm:$0xff] 0.0
          %313 = vst [vmem:[#allocation2 + $0xc0] sm:$0xff] 0.0
          %314 = vst [vmem:[#allocation2 + $0xc8] sm:$0xff] 0.0
          %315 = vst [vmem:[#allocation2 + $0xd0] sm:$0xff] 0.0
          %316 = vst [vmem:[#allocation2 + $0xd8] sm:$0xff] 0.0
          %317 = vst [vmem:[#allocation2 + $0xe0] sm:$0xff] 0.0
          %318 = vst [vmem:[#allocation2 + $0xe8] sm:$0xff] 0.0
          %319 = vst [vmem:[#allocation2 + $0xf0] sm:$0xff] 0.0
          %320 = vst [vmem:[#allocation2 + $0xf8] sm:$0xff] 0.0
          %321 = vst [vmem:[#allocation2 + $0x100] sm:$0xff] 0.0
          %322 = vst [vmem:[#allocation2 + $0x108] sm:$0xff] 0.0
          %323 = vst [vmem:[#allocation2 + $0x110] sm:$0xff] 0.0
          %324 = vst [vmem:[#allocation2 + $0x118] sm:$0xff] 0.0
          %325 = vst [vmem:[#allocation2 + $0x120] sm:$0xff] 0.0
          %326 = vst [vmem:[#allocation2 + $0x128] sm:$0xff] 0.0
          %327 = vst [vmem:[#allocation2 + $0x130] sm:$0xff] 0.0
          %328 = vst [vmem:[#allocation2 + $0x138] sm:$0xff] 0.0
          %329 = vst [vmem:[#allocation2 + $0x140] sm:$0xff] 0.0
          %330 = vst [vmem:[#allocation2 + $0x148] sm:$0xff] 0.0
          %331 = vst [vmem:[#allocation2 + $0x150] sm:$0xff] 0.0
          %332 = vst [vmem:[#allocation2 + $0x158] sm:$0xff] 0.0
          %333 = vst [vmem:[#allocation2 + $0x160] sm:$0xff] 0.0
          %334 = vst [vmem:[#allocation2 + $0x168] sm:$0xff] 0.0
          %335 = vst [vmem:[#allocation2 + $0x170] sm:$0xff] 0.0
          %336 = vst [vmem:[#allocation2 + $0x178] sm:$0xff] 0.0
          %337 = vst [vmem:[#allocation2 + $0x180] sm:$0xff] 0.0
          %338 = vst [vmem:[#allocation2 + $0x188] sm:$0xff] 0.0
          %339 = vst [vmem:[#allocation2 + $0x190] sm:$0xff] 0.0
          %340 = vst [vmem:[#allocation2 + $0x198] sm:$0xff] 0.0
          %341 = vst [vmem:[#allocation2 + $0x1a0] sm:$0xff] 0.0
          %342 = vst [vmem:[#allocation2 + $0x1a8] sm:$0xff] 0.0
          %343 = vst [vmem:[#allocation2 + $0x1b0] sm:$0xff] 0.0
          %344 = vst [vmem:[#allocation2 + $0x1b8] sm:$0xff] 0.0
          %345 = vst [vmem:[#allocation2 + $0x1c0] sm:$0xff] 0.0
          %346 = vst [vmem:[#allocation2 + $0x1c8] sm:$0xff] 0.0
          %347 = vst [vmem:[#allocation2 + $0x1d0] sm:$0xff] 0.0
          %348 = vst [vmem:[#allocation2 + $0x1d8] sm:$0xff] 0.0
          %349 = vst [vmem:[#allocation2 + $0x1e0] sm:$0xff] 0.0
          %350 = vst [vmem:[#allocation2 + $0x1e8] sm:$0xff] 0.0
          %351 = vst [vmem:[#allocation2 + $0x1f0] sm:$0xff] 0.0
          %352 = vst [vmem:[#allocation2 + $0x1f8] sm:$0xff] 0.0
          %353 = vst [vmem:[#allocation2 + $0x200] sm:$0xff] 0.0
          %354 = vst [vmem:[#allocation2 + $0x208] sm:$0xff] 0.0
          %355 = vst [vmem:[#allocation2 + $0x210] sm:$0xff] 0.0
          %356 = vst [vmem:[#allocation2 + $0x218] sm:$0xff] 0.0
          %357 = vst [vmem:[#allocation2 + $0x220] sm:$0xff] 0.0
          %358 = vst [vmem:[#allocation2 + $0x228] sm:$0xff] 0.0
          %359 = vst [vmem:[#allocation2 + $0x230] sm:$0xff] 0.0
          %360 = vst [vmem:[#allocation2 + $0x238] sm:$0xff] 0.0
          %361 = vst [vmem:[#allocation2 + $0x240] sm:$0xff] 0.0
          %362 = vst [vmem:[#allocation2 + $0x248] sm:$0xff] 0.0
          %363 = vst [vmem:[#allocation2 + $0x250] sm:$0xff] 0.0
          %364 = vst [vmem:[#allocation2 + $0x258] sm:$0xff] 0.0
          %365 = vst [vmem:[#allocation2 + $0x260] sm:$0xff] 0.0
          %366 = vst [vmem:[#allocation2 + $0x268] sm:$0xff] 0.0
          %367 = vst [vmem:[#allocation2 + $0x270] sm:$0xff] 0.0
          %368 = vst [vmem:[#allocation2 + $0x278] sm:$0xff] 0.0
          %369 = vst [vmem:[#allocation2 + $0x280] sm:$0xff] 0.0
          %370 = vst [vmem:[#allocation2 + $0x288] sm:$0xff] 0.0
          %371 = vst [vmem:[#allocation2 + $0x290] sm:$0xff] 0.0
          %372 = vst [vmem:[#allocation2 + $0x298] sm:$0xff] 0.0
          %373 = vst [vmem:[#allocation2 + $0x2a0] sm:$0xff] 0.0
          %374 = vst [vmem:[#allocation2 + $0x2a8] sm:$0xff] 0.0
          %375 = vst [vmem:[#allocation2 + $0x2b0] sm:$0xff] 0.0
          %376 = vst [vmem:[#allocation2 + $0x2b8] sm:$0xff] 0.0
          %377 = vst [vmem:[#allocation2 + $0x2c0] sm:$0xff] 0.0
          %378 = vst [vmem:[#allocation2 + $0x2c8] sm:$0xff] 0.0
          %379 = vst [vmem:[#allocation2 + $0x2d0] sm:$0xff] 0.0
          %380 = vst [vmem:[#allocation2 + $0x2d8] sm:$0xff] 0.0
          %381 = vst [vmem:[#allocation2 + $0x2e0] sm:$0xff] 0.0
          %382 = vst [vmem:[#allocation2 + $0x2e8] sm:$0xff] 0.0
          %383 = vst [vmem:[#allocation2 + $0x2f0] sm:$0xff] 0.0
          %384 = vst [vmem:[#allocation2 + $0x2f8] sm:$0xff] 0.0
        $region48: #{tpu_custom_call.1} parent=31 // pred_fallthru
          _
        %v385 = vld [vmem:[#allocation2] sm:$0xff]
        %v386 = vld [vmem:[#allocation2 + $0x8] sm:$0xff]
        %v387 = vld [vmem:[#allocation2 + $0x10] sm:$0xff]
        %v388 = vld [vmem:[#allocation2 + $0x18] sm:$0xff]
        %v389 = vld [vmem:[#allocation2 + $0x20] sm:$0xff]
        %v390 = vld [vmem:[#allocation2 + $0x28] sm:$0xff]
        %v391 = vld [vmem:[#allocation2 + $0x30] sm:$0xff]
        %v392 = vld [vmem:[#allocation2 + $0x38] sm:$0xff]
        %v393 = vld [vmem:[#allocation2 + $0x40] sm:$0xff]
        %v394 = vld [vmem:[#allocation2 + $0x48] sm:$0xff]
        %v395 = vld [vmem:[#allocation2 + $0x50] sm:$0xff]
        %v396 = vld [vmem:[#allocation2 + $0x58] sm:$0xff]
        %v397 = vld [vmem:[#allocation2 + $0x60] sm:$0xff]
        %v398 = vld [vmem:[#allocation2 + $0x68] sm:$0xff]
        %v399 = vld [vmem:[#allocation2 + $0x70] sm:$0xff]
        %v400 = vld [vmem:[#allocation2 + $0x78] sm:$0xff]
        %v401 = vld [vmem:[#allocation2 + $0x80] sm:$0xff]
        %v402 = vld [vmem:[#allocation2 + $0x88] sm:$0xff]
        %v403 = vld [vmem:[#allocation2 + $0x90] sm:$0xff]
        %v404 = vld [vmem:[#allocation2 + $0x98] sm:$0xff]
        %v405 = vld [vmem:[#allocation2 + $0xa0] sm:$0xff]
        %v406 = vld [vmem:[#allocation2 + $0xa8] sm:$0xff]
        %v407 = vld [vmem:[#allocation2 + $0xb0] sm:$0xff]
        %v408 = vld [vmem:[#allocation2 + $0xb8] sm:$0xff]
        %v409 = vld [vmem:[#allocation2 + $0xc0] sm:$0xff]
        %v410 = vld [vmem:[#allocation2 + $0xc8] sm:$0xff]
        %v411 = vld [vmem:[#allocation2 + $0xd0] sm:$0xff]
        %v412 = vld [vmem:[#allocation2 + $0xd8] sm:$0xff]
        %v413 = vld [vmem:[#allocation2 + $0xe0] sm:$0xff]
        %v414 = vld [vmem:[#allocation2 + $0xe8] sm:$0xff]
        %v415 = vld [vmem:[#allocation2 + $0xf0] sm:$0xff]
        %v416 = vld [vmem:[#allocation2 + $0xf8] sm:$0xff]
        %v417 = vld [vmem:[#allocation2 + $0x100] sm:$0xff]
        %v418 = vld [vmem:[#allocation2 + $0x108] sm:$0xff]
        %v419 = vld [vmem:[#allocation2 + $0x110] sm:$0xff]
        %v420 = vld [vmem:[#allocation2 + $0x118] sm:$0xff]
        %v421 = vld [vmem:[#allocation2 + $0x120] sm:$0xff]
        %v422 = vld [vmem:[#allocation2 + $0x128] sm:$0xff]
        %v423 = vld [vmem:[#allocation2 + $0x130] sm:$0xff]
        %v424 = vld [vmem:[#allocation2 + $0x138] sm:$0xff]
        %v425 = vld [vmem:[#allocation2 + $0x140] sm:$0xff]
        %v426 = vld [vmem:[#allocation2 + $0x148] sm:$0xff]
        %v427 = vld [vmem:[#allocation2 + $0x150] sm:$0xff]
        %v428 = vld [vmem:[#allocation2 + $0x158] sm:$0xff]
        %v429 = vld [vmem:[#allocation2 + $0x160] sm:$0xff]
        %v430 = vld [vmem:[#allocation2 + $0x168] sm:$0xff]
        %v431 = vld [vmem:[#allocation2 + $0x170] sm:$0xff]
        %v432 = vld [vmem:[#allocation2 + $0x178] sm:$0xff]
        %v433 = vld [vmem:[#allocation2 + $0x180] sm:$0xff]
        %v434 = vld [vmem:[#allocation2 + $0x188] sm:$0xff]
        %v435 = vld [vmem:[#allocation2 + $0x190] sm:$0xff]
        %v436 = vld [vmem:[#allocation2 + $0x198] sm:$0xff]
        %v437 = vld [vmem:[#allocation2 + $0x1a0] sm:$0xff]
        %v438 = vld [vmem:[#allocation2 + $0x1a8] sm:$0xff]
        %v439 = vld [vmem:[#allocation2 + $0x1b0] sm:$0xff]
        %v440 = vld [vmem:[#allocation2 + $0x1b8] sm:$0xff]
        %v441 = vld [vmem:[#allocation2 + $0x1c0] sm:$0xff]
        %v442 = vld [vmem:[#allocation2 + $0x1c8] sm:$0xff]
        %v443 = vld [vmem:[#allocation2 + $0x1d0] sm:$0xff]
        %v444 = vld [vmem:[#allocation2 + $0x1d8] sm:$0xff]
        %v445 = vld [vmem:[#allocation2 + $0x1e0] sm:$0xff]
        %v446 = vld [vmem:[#allocation2 + $0x1e8] sm:$0xff]
        %v447 = vld [vmem:[#allocation2 + $0x1f0] sm:$0xff]
        %v448 = vld [vmem:[#allocation2 + $0x1f8] sm:$0xff]
        %v449 = vld [vmem:[#allocation2 + $0x200] sm:$0xff]
        %v450 = vld [vmem:[#allocation2 + $0x208] sm:$0xff]
        %v451 = vld [vmem:[#allocation2 + $0x210] sm:$0xff]
        %v452 = vld [vmem:[#allocation2 + $0x218] sm:$0xff]
        %v453 = vld [vmem:[#allocation2 + $0x220] sm:$0xff]
        %v454 = vld [vmem:[#allocation2 + $0x228] sm:$0xff]
        %v455 = vld [vmem:[#allocation2 + $0x230] sm:$0xff]
        %v456 = vld [vmem:[#allocation2 + $0x238] sm:$0xff]
        %v457 = vld [vmem:[#allocation2 + $0x240] sm:$0xff]
        %v458 = vld [vmem:[#allocation2 + $0x248] sm:$0xff]
        %v459 = vld [vmem:[#allocation2 + $0x250] sm:$0xff]
        %v460 = vld [vmem:[#allocation2 + $0x258] sm:$0xff]
        %v461 = vld [vmem:[#allocation2 + $0x260] sm:$0xff]
        %v462 = vld [vmem:[#allocation2 + $0x268] sm:$0xff]
        %v463 = vld [vmem:[#allocation2 + $0x270] sm:$0xff]
        %v464 = vld [vmem:[#allocation2 + $0x278] sm:$0xff]
        %v465 = vld [vmem:[#allocation2 + $0x280] sm:$0xff]
        %v466 = vld [vmem:[#allocation2 + $0x288] sm:$0xff]
        %v467 = vld [vmem:[#allocation2 + $0x290] sm:$0xff]
        %v468 = vld [vmem:[#allocation2 + $0x298] sm:$0xff]
        %v469 = vld [vmem:[#allocation2 + $0x2a0] sm:$0xff]
        %v470 = vld [vmem:[#allocation2 + $0x2a8] sm:$0xff]
        %v471 = vld [vmem:[#allocation2 + $0x2b0] sm:$0xff]
        %v472 = vld [vmem:[#allocation2 + $0x2b8] sm:$0xff]
        %v473 = vld [vmem:[#allocation2 + $0x2c0] sm:$0xff]
        %v474 = vld [vmem:[#allocation2 + $0x2c8] sm:$0xff]
        %v475 = vld [vmem:[#allocation2 + $0x2d0] sm:$0xff]
        %v476 = vld [vmem:[#allocation2 + $0x2d8] sm:$0xff]
        %v477 = vld [vmem:[#allocation2 + $0x2e0] sm:$0xff]
        %v478 = vld [vmem:[#allocation2 + $0x2e8] sm:$0xff]
        %v479 = vld [vmem:[#allocation2 + $0x2f0] sm:$0xff]
        %v480 = vld [vmem:[#allocation2 + $0x2f8] sm:$0xff]
        %v481 = vld [vmem:[#allocation3] sm:$0xff]
        %v482 = vld [vmem:[#allocation3 + $0x8] sm:$0xff]
        %v483 = vld [vmem:[#allocation3 + $0x10] sm:$0xff]
        %v484 = vld [vmem:[#allocation3 + $0x18] sm:$0xff]
        %v485 = vld [vmem:[#allocation3 + $0x20] sm:$0xff]
        %v486 = vld [vmem:[#allocation3 + $0x28] sm:$0xff]
        %v487 = vld [vmem:[#allocation3 + $0x30] sm:$0xff]
        %v488 = vld [vmem:[#allocation3 + $0x38] sm:$0xff]
        %v489 = vld [vmem:[#allocation3 + $0x40] sm:$0xff]
        %v490 = vld [vmem:[#allocation3 + $0x48] sm:$0xff]
        %v491 = vld [vmem:[#allocation3 + $0x50] sm:$0xff]
        %v492 = vld [vmem:[#allocation3 + $0x58] sm:$0xff]
        %v493 = vld [vmem:[#allocation3 + $0x60] sm:$0xff]
        %v494 = vld [vmem:[#allocation3 + $0x68] sm:$0xff]
        %v495 = vld [vmem:[#allocation3 + $0x70] sm:$0xff]
        %v496 = vld [vmem:[#allocation3 + $0x78] sm:$0xff]
        %v497 = vld [vmem:[#allocation3 + $0x80] sm:$0xff]
        %v498 = vld [vmem:[#allocation3 + $0x88] sm:$0xff]
        %v499 = vld [vmem:[#allocation3 + $0x90] sm:$0xff]
        %v500 = vld [vmem:[#allocation3 + $0x98] sm:$0xff]
        %v501 = vld [vmem:[#allocation3 + $0xa0] sm:$0xff]
        %v502 = vld [vmem:[#allocation3 + $0xa8] sm:$0xff]
        %v503 = vld [vmem:[#allocation3 + $0xb0] sm:$0xff]
        %v504 = vld [vmem:[#allocation3 + $0xb8] sm:$0xff]
        %v505 = vld [vmem:[#allocation3 + $0xc0] sm:$0xff]
        %v506 = vld [vmem:[#allocation3 + $0xc8] sm:$0xff]
        %v507 = vld [vmem:[#allocation3 + $0xd0] sm:$0xff]
        %v508 = vld [vmem:[#allocation3 + $0xd8] sm:$0xff]
        %v509 = vld [vmem:[#allocation3 + $0xe0] sm:$0xff]
        %v510 = vld [vmem:[#allocation3 + $0xe8] sm:$0xff]
        %v511 = vld [vmem:[#allocation3 + $0xf0] sm:$0xff]
        %v512 = vld [vmem:[#allocation3 + $0xf8] sm:$0xff]
        %v513 = vld [vmem:[#allocation3 + $0x100] sm:$0xff]
        %v514 = vld [vmem:[#allocation3 + $0x108] sm:$0xff]
        %v515 = vld [vmem:[#allocation3 + $0x110] sm:$0xff]
        %v516 = vld [vmem:[#allocation3 + $0x118] sm:$0xff]
        %v517 = vld [vmem:[#allocation3 + $0x120] sm:$0xff]
        %v518 = vld [vmem:[#allocation3 + $0x128] sm:$0xff]
        %v519 = vld [vmem:[#allocation3 + $0x130] sm:$0xff]
        %v520 = vld [vmem:[#allocation3 + $0x138] sm:$0xff]
        %v521 = vld [vmem:[#allocation3 + $0x140] sm:$0xff]
        %v522 = vld [vmem:[#allocation3 + $0x148] sm:$0xff]
        %v523 = vld [vmem:[#allocation3 + $0x150] sm:$0xff]
        %v524 = vld [vmem:[#allocation3 + $0x158] sm:$0xff]
        %v525 = vld [vmem:[#allocation3 + $0x160] sm:$0xff]
        %v526 = vld [vmem:[#allocation3 + $0x168] sm:$0xff]
        %v527 = vld [vmem:[#allocation3 + $0x170] sm:$0xff]
        %v528 = vld [vmem:[#allocation3 + $0x178] sm:$0xff]
        %v529 = vld [vmem:[#allocation3 + $0x180] sm:$0xff]
        %v530 = vld [vmem:[#allocation3 + $0x188] sm:$0xff]
        %v531 = vld [vmem:[#allocation3 + $0x190] sm:$0xff]
        %v532 = vld [vmem:[#allocation3 + $0x198] sm:$0xff]
        %v533 = vld [vmem:[#allocation3 + $0x1a0] sm:$0xff]
        %v534 = vld [vmem:[#allocation3 + $0x1a8] sm:$0xff]
        %v535 = vld [vmem:[#allocation3 + $0x1b0] sm:$0xff]
        %v536 = vld [vmem:[#allocation3 + $0x1b8] sm:$0xff]
        %v537 = vld [vmem:[#allocation3 + $0x1c0] sm:$0xff]
        %v538 = vld [vmem:[#allocation3 + $0x1c8] sm:$0xff]
        %v539 = vld [vmem:[#allocation3 + $0x1d0] sm:$0xff]
        %v540 = vld [vmem:[#allocation3 + $0x1d8] sm:$0xff]
        %v541 = vld [vmem:[#allocation3 + $0x1e0] sm:$0xff]
        %v542 = vld [vmem:[#allocation3 + $0x1e8] sm:$0xff]
        %v543 = vld [vmem:[#allocation3 + $0x1f0] sm:$0xff]
        %v544 = vld [vmem:[#allocation3 + $0x1f8] sm:$0xff]
        %v545 = vld [vmem:[%s241] sm:$0xff]
        %v546 = vld [vmem:[%s241 + $0x8] sm:$0xff]
        %v547 = vld [vmem:[%s241 + $0x10] sm:$0xff]
        %v548 = vld [vmem:[%s241 + $0x18] sm:$0xff]
        %v549 = vld [vmem:[%s241 + $0x20] sm:$0xff]
        %v550 = vld [vmem:[%s241 + $0x28] sm:$0xff]
        %v551 = vld [vmem:[%s241 + $0x30] sm:$0xff]
        %v552 = vld [vmem:[%s241 + $0x38] sm:$0xff]
        %v553 = vld [vmem:[%s241 + $0x40] sm:$0xff]
        %v554 = vld [vmem:[%s241 + $0x48] sm:$0xff]
        %v555 = vld [vmem:[%s241 + $0x50] sm:$0xff]
        %v556 = vld [vmem:[%s241 + $0x58] sm:$0xff]
        %v557 = vld [vmem:[%s241 + $0x60] sm:$0xff]
        %v558 = vld [vmem:[%s241 + $0x68] sm:$0xff]
        %v559 = vld [vmem:[%s241 + $0x70] sm:$0xff]
        %v560 = vld [vmem:[%s241 + $0x78] sm:$0xff]
        %v561 = vld [vmem:[%s241 + $0x80] sm:$0xff]
        %v562 = vld [vmem:[%s241 + $0x88] sm:$0xff]
        %v563 = vld [vmem:[%s241 + $0x90] sm:$0xff]
        %v564 = vld [vmem:[%s241 + $0x98] sm:$0xff]
        %v565 = vld [vmem:[%s241 + $0xa0] sm:$0xff]
        %v566 = vld [vmem:[%s241 + $0xa8] sm:$0xff]
        %v567 = vld [vmem:[%s241 + $0xb0] sm:$0xff]
        %v568 = vld [vmem:[%s241 + $0xb8] sm:$0xff]
        %v569 = vld [vmem:[%s241 + $0xc0] sm:$0xff]
        %v570 = vld [vmem:[%s241 + $0xc8] sm:$0xff]
        %v571 = vld [vmem:[%s241 + $0xd0] sm:$0xff]
        %v572 = vld [vmem:[%s241 + $0xd8] sm:$0xff]
        %v573 = vld [vmem:[%s241 + $0xe0] sm:$0xff]
        %v574 = vld [vmem:[%s241 + $0xe8] sm:$0xff]
        %v575 = vld [vmem:[%s241 + $0xf0] sm:$0xff]
        %v576 = vld [vmem:[%s241 + $0xf8] sm:$0xff]
        %v577 = vld [vmem:[%s241 + $0x100] sm:$0xff]
        %v578 = vld [vmem:[%s241 + $0x108] sm:$0xff]
        %v579 = vld [vmem:[%s241 + $0x110] sm:$0xff]
        %v580 = vld [vmem:[%s241 + $0x118] sm:$0xff]
        %v581 = vld [vmem:[%s241 + $0x120] sm:$0xff]
        %v582 = vld [vmem:[%s241 + $0x128] sm:$0xff]
        %v583 = vld [vmem:[%s241 + $0x130] sm:$0xff]
        %v584 = vld [vmem:[%s241 + $0x138] sm:$0xff]
        %v585 = vld [vmem:[%s241 + $0x140] sm:$0xff]
        %v586 = vld [vmem:[%s241 + $0x148] sm:$0xff]
        %v587 = vld [vmem:[%s241 + $0x150] sm:$0xff]
        %v588 = vld [vmem:[%s241 + $0x158] sm:$0xff]
        %v589 = vld [vmem:[%s241 + $0x160] sm:$0xff]
        %v590 = vld [vmem:[%s241 + $0x168] sm:$0xff]
        %v591 = vld [vmem:[%s241 + $0x170] sm:$0xff]
        %v592 = vld [vmem:[%s241 + $0x178] sm:$0xff]
        %v593 = vld [vmem:[%s241 + $0x180] sm:$0xff]
        %v594 = vld [vmem:[%s241 + $0x188] sm:$0xff]
        %v595 = vld [vmem:[%s241 + $0x190] sm:$0xff]
        %v596 = vld [vmem:[%s241 + $0x198] sm:$0xff]
        %v597 = vld [vmem:[%s241 + $0x1a0] sm:$0xff]
        %v598 = vld [vmem:[%s241 + $0x1a8] sm:$0xff]
        %v599 = vld [vmem:[%s241 + $0x1b0] sm:$0xff]
        %v600 = vld [vmem:[%s241 + $0x1b8] sm:$0xff]
        %v601 = vld [vmem:[%s241 + $0x1c0] sm:$0xff]
        %v602 = vld [vmem:[%s241 + $0x1c8] sm:$0xff]
        %v603 = vld [vmem:[%s241 + $0x1d0] sm:$0xff]
        %v604 = vld [vmem:[%s241 + $0x1d8] sm:$0xff]
        %v605 = vld [vmem:[%s241 + $0x1e0] sm:$0xff]
        %v606 = vld [vmem:[%s241 + $0x1e8] sm:$0xff]
        %v607 = vld [vmem:[%s241 + $0x1f0] sm:$0xff]
        %v608 = vld [vmem:[%s241 + $0x1f8] sm:$0xff]
        %v609 = vld [vmem:[%s241 + $0x200] sm:$0xff]
        %v610 = vld [vmem:[%s241 + $0x208] sm:$0xff]
        %v611 = vld [vmem:[%s241 + $0x210] sm:$0xff]
        %v612 = vld [vmem:[%s241 + $0x218] sm:$0xff]
        %v613 = vld [vmem:[%s241 + $0x220] sm:$0xff]
        %v614 = vld [vmem:[%s241 + $0x228] sm:$0xff]
        %v615 = vld [vmem:[%s241 + $0x230] sm:$0xff]
        %v616 = vld [vmem:[%s241 + $0x238] sm:$0xff]
        %v617 = vld [vmem:[%s241 + $0x240] sm:$0xff]
        %v618 = vld [vmem:[%s241 + $0x248] sm:$0xff]
        %v619 = vld [vmem:[%s241 + $0x250] sm:$0xff]
        %v620 = vld [vmem:[%s241 + $0x258] sm:$0xff]
        %v621 = vld [vmem:[%s241 + $0x260] sm:$0xff]
        %v622 = vld [vmem:[%s241 + $0x268] sm:$0xff]
        %v623 = vld [vmem:[%s241 + $0x270] sm:$0xff]
        %v624 = vld [vmem:[%s241 + $0x278] sm:$0xff]
        %v625 = vld [vmem:[%s241 + $0x280] sm:$0xff]
        %v626 = vld [vmem:[%s241 + $0x288] sm:$0xff]
        %v627 = vld [vmem:[%s241 + $0x290] sm:$0xff]
        %v628 = vld [vmem:[%s241 + $0x298] sm:$0xff]
        %v629 = vld [vmem:[%s241 + $0x2a0] sm:$0xff]
        %v630 = vld [vmem:[%s241 + $0x2a8] sm:$0xff]
        %v631 = vld [vmem:[%s241 + $0x2b0] sm:$0xff]
        %v632 = vld [vmem:[%s241 + $0x2b8] sm:$0xff]
        %v633 = vld [vmem:[%s241 + $0x2c0] sm:$0xff]
        %v634 = vld [vmem:[%s241 + $0x2c8] sm:$0xff]
        %v635 = vld [vmem:[%s241 + $0x2d0] sm:$0xff]
        %v636 = vld [vmem:[%s241 + $0x2d8] sm:$0xff]
        %v637 = vld [vmem:[%s241 + $0x2e0] sm:$0xff]
        %v638 = vld [vmem:[%s241 + $0x2e8] sm:$0xff]
        %v639 = vld [vmem:[%s241 + $0x2f0] sm:$0xff]
        %v640 = vld [vmem:[%s241 + $0x2f8] sm:$0xff]
        %641 = vmatprep.subr.mxu0 %v591
        %642 = vmatpush1.msra.mxu0 %v590
        %643 = vmatprep.subr.mxu0 %v588
        %644 = vmatpush1.msra.mxu0 %v587
        %645 = vmatprep.subr.mxu0 %v585
        %646 = vmatpush1.msra.mxu0 %v584
        %647 = vmatprep.subr.mxu0 %v582
        %648 = vmatpush1.msra.mxu0 %v581
        %649 = vmatprep.subr.mxu0 %v579
        %650 = vmatpush1.msra.mxu0 %v578
        %651 = vmatprep.subr.mxu0 %v576
        %652 = vmatpush1.msra.mxu0 %v575
        %653 = vmatprep.subr.mxu0 %v573
        %654 = vmatpush1.msra.mxu0 %v572
        %655 = vmatprep.subr.mxu0 %v570
        %656 = vmatpush1.msra.mxu0 %v569
        %657 = vmatprep.subr.mxu0 %v567
        %658 = vmatpush1.msra.mxu0 %v566
        %659 = vmatprep.subr.mxu0 %v564
        %660 = vmatpush1.msra.mxu0 %v563
        %661 = vmatprep.subr.mxu0 %v561
        %662 = vmatpush1.msra.mxu0 %v560
        %663 = vmatprep.subr.mxu0 %v558
        %664 = vmatpush1.msra.mxu0 %v557
        %665 = vmatprep.subr.mxu0 %v555
        %666 = vmatpush1.msra.mxu0 %v554
        %667 = vmatprep.subr.mxu0 %v552
        %668 = vmatpush1.msra.mxu0 %v551
        %669 = vmatprep.subr.mxu0 %v549
        %670 = vmatpush1.msra.mxu0 %v548
        %671 = vmatprep.subr.mxu0 %v546
        %672 = vmatpush1.msra.mxu0 %v545
        %673 = vmatprep.subr.mxu0 %v639
        %674 = vmatpush2.msra.mxu0 %v638
        %675 = vmatprep.subr.mxu0 %v636
        %676 = vmatpush2.msra.mxu0 %v635
        %677 = vmatprep.subr.mxu0 %v633
        %678 = vmatpush2.msra.mxu0 %v632
        %679 = vmatprep.subr.mxu0 %v630
        %680 = vmatpush2.msra.mxu0 %v629
        %681 = vmatprep.subr.mxu0 %v627
        %682 = vmatpush2.msra.mxu0 %v626
        %683 = vmatprep.subr.mxu0 %v624
        %684 = vmatpush2.msra.mxu0 %v623
        %685 = vmatprep.subr.mxu0 %v621
        %686 = vmatpush2.msra.mxu0 %v620
        %687 = vmatprep.subr.mxu0 %v618
        %688 = vmatpush2.msra.mxu0 %v617
        %689 = vmatprep.subr.mxu0 %v615
        %690 = vmatpush2.msra.mxu0 %v614
        %691 = vmatprep.subr.mxu0 %v612
        %692 = vmatpush2.msra.mxu0 %v611
        %693 = vmatprep.subr.mxu0 %v609
        %694 = vmatpush2.msra.mxu0 %v608
        %695 = vmatprep.subr.mxu0 %v606
        %696 = vmatpush2.msra.mxu0 %v605
        %697 = vmatprep.subr.mxu0 %v603
        %698 = vmatpush2.msra.mxu0 %v602
        %699 = vmatprep.subr.mxu0 %v600
        %700 = vmatpush2.msra.mxu0 %v599
        %701 = vmatprep.subr.mxu0 %v597
        %702 = vmatpush2.msra.mxu0 %v596
        %703 = vmatprep.subr.mxu0 %v594
        %704 = vmatpush2.msra.mxu0 %v593
        %705 = vmatprep.mubr.f32.mxu0 %v482
        %706 = vmatmul.mubr.f32.gmra.mxu0 %v481
        %v707 = vpop.f32.mrf.mxu0
        %v708 = vadd.f32 0.0, %v707
        %v709 = vpop.f32.mrf.mxu0
        %v710 = vadd.f32 0.0, %v709
        %711 = vmatprep.mubr.f32.mxu0 %v484
        %712 = vmatmul.mubr.f32.gmra.mxu0 %v483
        %v713 = vpop.f32.mrf.mxu0
        %v714 = vadd.f32 0.0, %v713
        %v715 = vpop.f32.mrf.mxu0
        %v716 = vadd.f32 0.0, %v715
        %717 = vmatprep.mubr.f32.mxu0 %v486
        %718 = vmatmul.mubr.f32.gmra.mxu0 %v485
        %v719 = vpop.f32.mrf.mxu0
        %v720 = vadd.f32 0.0, %v719
        %v721 = vpop.f32.mrf.mxu0
        %v722 = vadd.f32 0.0, %v721
        %723 = vmatprep.mubr.f32.mxu0 %v488
        %724 = vmatmul.mubr.f32.gmra.mxu0 %v487
        %v725 = vpop.f32.mrf.mxu0
        %v726 = vadd.f32 0.0, %v725
        %v727 = vpop.f32.mrf.mxu0
        %v728 = vadd.f32 0.0, %v727
        %729 = vmatprep.mubr.f32.mxu0 %v490
        %730 = vmatmul.mubr.f32.gmra.mxu0 %v489
        %v731 = vpop.f32.mrf.mxu0
        %v732 = vadd.f32 0.0, %v731
        %v733 = vpop.f32.mrf.mxu0
        %v734 = vadd.f32 0.0, %v733
        %735 = vmatprep.mubr.f32.mxu0 %v492
        %736 = vmatmul.mubr.f32.gmra.mxu0 %v491
        %v737 = vpop.f32.mrf.mxu0
        %v738 = vadd.f32 0.0, %v737
        %v739 = vpop.f32.mrf.mxu0
        %v740 = vadd.f32 0.0, %v739
        %741 = vmatprep.mubr.f32.mxu0 %v494
        %742 = vmatmul.mubr.f32.gmra.mxu0 %v493
        %v743 = vpop.f32.mrf.mxu0
        %v744 = vadd.f32 0.0, %v743
        %v745 = vpop.f32.mrf.mxu0
        %v746 = vadd.f32 0.0, %v745
        %747 = vmatprep.mubr.f32.mxu0 %v496
        %748 = vmatmul.mubr.f32.gmra.mxu0 %v495
        %v749 = vpop.f32.mrf.mxu0
        %v750 = vadd.f32 0.0, %v749
        %v751 = vpop.f32.mrf.mxu0
        %v752 = vadd.f32 0.0, %v751
        %753 = vmatprep.mubr.f32.mxu0 %v498
        %754 = vmatmul.mubr.f32.gmra.mxu0 %v497
        %v755 = vpop.f32.mrf.mxu0
        %v756 = vadd.f32 0.0, %v755
        %v757 = vpop.f32.mrf.mxu0
        %v758 = vadd.f32 0.0, %v757
        %759 = vmatprep.mubr.f32.mxu0 %v500
        %760 = vmatmul.mubr.f32.gmra.mxu0 %v499
        %v761 = vpop.f32.mrf.mxu0
        %v762 = vadd.f32 0.0, %v761
        %v763 = vpop.f32.mrf.mxu0
        %v764 = vadd.f32 0.0, %v763
        %765 = vmatprep.mubr.f32.mxu0 %v502
        %766 = vmatmul.mubr.f32.gmra.mxu0 %v501
        %v767 = vpop.f32.mrf.mxu0
        %v768 = vadd.f32 0.0, %v767
        %v769 = vpop.f32.mrf.mxu0
        %v770 = vadd.f32 0.0, %v769
        %771 = vmatprep.mubr.f32.mxu0 %v504
        %772 = vmatmul.mubr.f32.gmra.mxu0 %v503
        %v773 = vpop.f32.mrf.mxu0
        %v774 = vadd.f32 0.0, %v773
        %v775 = vpop.f32.mrf.mxu0
        %v776 = vadd.f32 0.0, %v775
        %777 = vmatprep.mubr.f32.mxu0 %v506
        %778 = vmatmul.mubr.f32.gmra.mxu0 %v505
        %v779 = vpop.f32.mrf.mxu0
        %v780 = vadd.f32 0.0, %v779
        %v781 = vpop.f32.mrf.mxu0
        %v782 = vadd.f32 0.0, %v781
        %783 = vmatprep.mubr.f32.mxu0 %v508
        %784 = vmatmul.mubr.f32.gmra.mxu0 %v507
        %v785 = vpop.f32.mrf.mxu0
        %v786 = vadd.f32 0.0, %v785
        %v787 = vpop.f32.mrf.mxu0
        %v788 = vadd.f32 0.0, %v787
        %789 = vmatprep.mubr.f32.mxu0 %v510
        %790 = vmatmul.mubr.f32.gmra.mxu0 %v509
        %v791 = vpop.f32.mrf.mxu0
        %v792 = vadd.f32 0.0, %v791
        %v793 = vpop.f32.mrf.mxu0
        %v794 = vadd.f32 0.0, %v793
        %795 = vmatprep.mubr.f32.mxu0 %v512
        %796 = vmatmul.mubr.f32.gmra.mxu0 %v511
        %v797 = vpop.f32.mrf.mxu0
        %v798 = vadd.f32 0.0, %v797
        %v799 = vpop.f32.mrf.mxu0
        %v800 = vadd.f32 0.0, %v799
        %801 = vmatprep.mubr.f32.mxu0 %v514
        %802 = vmatmul.mubr.f32.gmra.mxu0 %v513
        %v803 = vpop.f32.mrf.mxu0
        %v804 = vadd.f32 0.0, %v803
        %v805 = vpop.f32.mrf.mxu0
        %v806 = vadd.f32 0.0, %v805
        %807 = vmatprep.mubr.f32.mxu0 %v516
        %808 = vmatmul.mubr.f32.gmra.mxu0 %v515
        %v809 = vpop.f32.mrf.mxu0
        %v810 = vadd.f32 0.0, %v809
        %v811 = vpop.f32.mrf.mxu0
        %v812 = vadd.f32 0.0, %v811
        %813 = vmatprep.mubr.f32.mxu0 %v518
        %814 = vmatmul.mubr.f32.gmra.mxu0 %v517
        %v815 = vpop.f32.mrf.mxu0
        %v816 = vadd.f32 0.0, %v815
        %v817 = vpop.f32.mrf.mxu0
        %v818 = vadd.f32 0.0, %v817
        %819 = vmatprep.mubr.f32.mxu0 %v520
        %820 = vmatmul.mubr.f32.gmra.mxu0 %v519
        %v821 = vpop.f32.mrf.mxu0
        %v822 = vadd.f32 0.0, %v821
        %v823 = vpop.f32.mrf.mxu0
        %v824 = vadd.f32 0.0, %v823
        %825 = vmatprep.mubr.f32.mxu0 %v522
        %826 = vmatmul.mubr.f32.gmra.mxu0 %v521
        %v827 = vpop.f32.mrf.mxu0
        %v828 = vadd.f32 0.0, %v827
        %v829 = vpop.f32.mrf.mxu0
        %v830 = vadd.f32 0.0, %v829
        %831 = vmatprep.mubr.f32.mxu0 %v524
        %832 = vmatmul.mubr.f32.gmra.mxu0 %v523
        %v833 = vpop.f32.mrf.mxu0
        %v834 = vadd.f32 0.0, %v833
        %v835 = vpop.f32.mrf.mxu0
        %v836 = vadd.f32 0.0, %v835
        %837 = vmatprep.mubr.f32.mxu0 %v526
        %838 = vmatmul.mubr.f32.gmra.mxu0 %v525
        %v839 = vpop.f32.mrf.mxu0
        %v840 = vadd.f32 0.0, %v839
        %v841 = vpop.f32.mrf.mxu0
        %v842 = vadd.f32 0.0, %v841
        %843 = vmatprep.mubr.f32.mxu0 %v528
        %844 = vmatmul.mubr.f32.gmra.mxu0 %v527
        %v845 = vpop.f32.mrf.mxu0
        %v846 = vadd.f32 0.0, %v845
        %v847 = vpop.f32.mrf.mxu0
        %v848 = vadd.f32 0.0, %v847
        %849 = vmatprep.mubr.f32.mxu0 %v530
        %850 = vmatmul.mubr.f32.gmra.mxu0 %v529
        %v851 = vpop.f32.mrf.mxu0
        %v852 = vadd.f32 0.0, %v851
        %v853 = vpop.f32.mrf.mxu0
        %v854 = vadd.f32 0.0, %v853
        %855 = vmatprep.mubr.f32.mxu0 %v532
        %856 = vmatmul.mubr.f32.gmra.mxu0 %v531
        %v857 = vpop.f32.mrf.mxu0
        %v858 = vadd.f32 0.0, %v857
        %v859 = vpop.f32.mrf.mxu0
        %v860 = vadd.f32 0.0, %v859
        %861 = vmatprep.mubr.f32.mxu0 %v534
        %862 = vmatmul.mubr.f32.gmra.mxu0 %v533
        %v863 = vpop.f32.mrf.mxu0
        %v864 = vadd.f32 0.0, %v863
        %v865 = vpop.f32.mrf.mxu0
        %v866 = vadd.f32 0.0, %v865
        %867 = vmatprep.mubr.f32.mxu0 %v536
        %868 = vmatmul.mubr.f32.gmra.mxu0 %v535
        %v869 = vpop.f32.mrf.mxu0
        %v870 = vadd.f32 0.0, %v869
        %v871 = vpop.f32.mrf.mxu0
        %v872 = vadd.f32 0.0, %v871
        %873 = vmatprep.mubr.f32.mxu0 %v538
        %874 = vmatmul.mubr.f32.gmra.mxu0 %v537
        %v875 = vpop.f32.mrf.mxu0
        %v876 = vadd.f32 0.0, %v875
        %v877 = vpop.f32.mrf.mxu0
        %v878 = vadd.f32 0.0, %v877
        %879 = vmatprep.mubr.f32.mxu0 %v540
        %880 = vmatmul.mubr.f32.gmra.mxu0 %v539
        %v881 = vpop.f32.mrf.mxu0
        %v882 = vadd.f32 0.0, %v881
        %v883 = vpop.f32.mrf.mxu0
        %v884 = vadd.f32 0.0, %v883
        %885 = vmatprep.mubr.f32.mxu0 %v542
        %886 = vmatmul.mubr.f32.gmra.mxu0 %v541
        %v887 = vpop.f32.mrf.mxu0
        %v888 = vadd.f32 0.0, %v887
        %v889 = vpop.f32.mrf.mxu0
        %v890 = vadd.f32 0.0, %v889
        %891 = vmatprep.mubr.f32.mxu0 %v544
        %892 = vmatmul.mubr.f32.gmra.mxu0 %v543
        %v893 = vpop.f32.mrf.mxu0
        %v894 = vadd.f32 0.0, %v893
        %v895 = vpop.f32.mrf.mxu0
        %v896 = vadd.f32 0.0, %v895
        %897 = vdwg.mxu0
        %898 = vmatprep.subr.mxu0 0.0
        %899 = vmatpush1.msra.mxu0 %v592
        %900 = vmatprep.subr.mxu0 0.0
        %901 = vmatpush1.msra.mxu0 %v589
        %902 = vmatprep.subr.mxu0 0.0
        %903 = vmatpush1.msra.mxu0 %v586
        %904 = vmatprep.subr.mxu0 0.0
        %905 = vmatpush1.msra.mxu0 %v583
        %906 = vmatprep.subr.mxu0 0.0
        %907 = vmatpush1.msra.mxu0 %v580
        %908 = vmatprep.subr.mxu0 0.0
        %909 = vmatpush1.msra.mxu0 %v577
        %910 = vmatprep.subr.mxu0 0.0
        %911 = vmatpush1.msra.mxu0 %v574
        %912 = vmatprep.subr.mxu0 0.0
        %913 = vmatpush1.msra.mxu0 %v571
        %914 = vmatprep.subr.mxu0 0.0
        %915 = vmatpush1.msra.mxu0 %v568
        %916 = vmatprep.subr.mxu0 0.0
        %917 = vmatpush1.msra.mxu0 %v565
        %918 = vmatprep.subr.mxu0 0.0
        %919 = vmatpush1.msra.mxu0 %v562
        %920 = vmatprep.subr.mxu0 0.0
        %921 = vmatpush1.msra.mxu0 %v559
        %922 = vmatprep.subr.mxu0 0.0
        %923 = vmatpush1.msra.mxu0 %v556
        %924 = vmatprep.subr.mxu0 0.0
        %925 = vmatpush1.msra.mxu0 %v553
        %926 = vmatprep.subr.mxu0 0.0
        %927 = vmatpush1.msra.mxu0 %v550
        %928 = vmatprep.subr.mxu0 0.0
        %929 = vmatpush1.msra.mxu0 %v547
        %930 = vmatprep.subr.mxu0 0.0
        %931 = vmatpush2.msra.mxu0 %v640
        %932 = vmatprep.subr.mxu0 0.0
        %933 = vmatpush2.msra.mxu0 %v637
        %934 = vmatprep.subr.mxu0 0.0
        %935 = vmatpush2.msra.mxu0 %v634
        %936 = vmatprep.subr.mxu0 0.0
        %937 = vmatpush2.msra.mxu0 %v631
        %938 = vmatprep.subr.mxu0 0.0
        %939 = vmatpush2.msra.mxu0 %v628
        %940 = vmatprep.subr.mxu0 0.0
        %941 = vmatpush2.msra.mxu0 %v625
        %942 = vmatprep.subr.mxu0 0.0
        %943 = vmatpush2.msra.mxu0 %v622
        %944 = vmatprep.subr.mxu0 0.0
        %945 = vmatpush2.msra.mxu0 %v619
        %946 = vmatprep.subr.mxu0 0.0
        %947 = vmatpush2.msra.mxu0 %v616
        %948 = vmatprep.subr.mxu0 0.0
        %949 = vmatpush2.msra.mxu0 %v613
        %950 = vmatprep.subr.mxu0 0.0
        %951 = vmatpush2.msra.mxu0 %v610
        %952 = vmatprep.subr.mxu0 0.0
        %953 = vmatpush2.msra.mxu0 %v607
        %954 = vmatprep.subr.mxu0 0.0
        %955 = vmatpush2.msra.mxu0 %v604
        %956 = vmatprep.subr.mxu0 0.0
        %957 = vmatpush2.msra.mxu0 %v601
        %958 = vmatprep.subr.mxu0 0.0
        %959 = vmatpush2.msra.mxu0 %v598
        %960 = vmatprep.subr.mxu0 0.0
        %961 = vmatpush2.msra.mxu0 %v595
        %962 = vmatprep.mubr.f32.mxu0 %v482
        %963 = vmatmul.mubr.f32.gmra.mxu0 %v481
        %v964 = vpop.f32.mrf.mxu0
        %v965 = vadd.f32 0.0, %v964
        %v966 = vpop.f32.mrf.mxu0
        %967 = vmatprep.mubr.f32.mxu0 %v484
        %968 = vmatmul.mubr.f32.gmra.mxu0 %v483
        %v969 = vpop.f32.mrf.mxu0
        %v970 = vadd.f32 0.0, %v969
        %v971 = vpop.f32.mrf.mxu0
        %972 = vmatprep.mubr.f32.mxu0 %v486
        %973 = vmatmul.mubr.f32.gmra.mxu0 %v485
        %v974 = vpop.f32.mrf.mxu0
        %v975 = vadd.f32 0.0, %v974
        %v976 = vpop.f32.mrf.mxu0
        %977 = vmatprep.mubr.f32.mxu0 %v488
        %978 = vmatmul.mubr.f32.gmra.mxu0 %v487
        %v979 = vpop.f32.mrf.mxu0
        %v980 = vadd.f32 0.0, %v979
        %v981 = vpop.f32.mrf.mxu0
        %982 = vmatprep.mubr.f32.mxu0 %v490
        %983 = vmatmul.mubr.f32.gmra.mxu0 %v489
        %v984 = vpop.f32.mrf.mxu0
        %v985 = vadd.f32 0.0, %v984
        %v986 = vpop.f32.mrf.mxu0
        %987 = vmatprep.mubr.f32.mxu0 %v492
        %988 = vmatmul.mubr.f32.gmra.mxu0 %v491
        %v989 = vpop.f32.mrf.mxu0
        %v990 = vadd.f32 0.0, %v989
        %v991 = vpop.f32.mrf.mxu0
        %992 = vmatprep.mubr.f32.mxu0 %v494
        %993 = vmatmul.mubr.f32.gmra.mxu0 %v493
        %v994 = vpop.f32.mrf.mxu0
        %v995 = vadd.f32 0.0, %v994
        %v996 = vpop.f32.mrf.mxu0
        %997 = vmatprep.mubr.f32.mxu0 %v496
        %998 = vmatmul.mubr.f32.gmra.mxu0 %v495
        %v999 = vpop.f32.mrf.mxu0
        %v1000 = vadd.f32 0.0, %v999
        %v1001 = vpop.f32.mrf.mxu0
        %1002 = vmatprep.mubr.f32.mxu0 %v498
        %1003 = vmatmul.mubr.f32.gmra.mxu0 %v497
        %v1004 = vpop.f32.mrf.mxu0
        %v1005 = vadd.f32 0.0, %v1004
        %v1006 = vpop.f32.mrf.mxu0
        %1007 = vmatprep.mubr.f32.mxu0 %v500
        %1008 = vmatmul.mubr.f32.gmra.mxu0 %v499
        %v1009 = vpop.f32.mrf.mxu0
        %v1010 = vadd.f32 0.0, %v1009
        %v1011 = vpop.f32.mrf.mxu0
        %1012 = vmatprep.mubr.f32.mxu0 %v502
        %1013 = vmatmul.mubr.f32.gmra.mxu0 %v501
        %v1014 = vpop.f32.mrf.mxu0
        %v1015 = vadd.f32 0.0, %v1014
        %v1016 = vpop.f32.mrf.mxu0
        %1017 = vmatprep.mubr.f32.mxu0 %v504
        %1018 = vmatmul.mubr.f32.gmra.mxu0 %v503
        %v1019 = vpop.f32.mrf.mxu0
        %v1020 = vadd.f32 0.0, %v1019
        %v1021 = vpop.f32.mrf.mxu0
        %1022 = vmatprep.mubr.f32.mxu0 %v506
        %1023 = vmatmul.mubr.f32.gmra.mxu0 %v505
        %v1024 = vpop.f32.mrf.mxu0
        %v1025 = vadd.f32 0.0, %v1024
        %v1026 = vpop.f32.mrf.mxu0
        %1027 = vmatprep.mubr.f32.mxu0 %v508
        %1028 = vmatmul.mubr.f32.gmra.mxu0 %v507
        %v1029 = vpop.f32.mrf.mxu0
        %v1030 = vadd.f32 0.0, %v1029
        %v1031 = vpop.f32.mrf.mxu0
        %1032 = vmatprep.mubr.f32.mxu0 %v510
        %1033 = vmatmul.mubr.f32.gmra.mxu0 %v509
        %v1034 = vpop.f32.mrf.mxu0
        %v1035 = vadd.f32 0.0, %v1034
        %v1036 = vpop.f32.mrf.mxu0
        %1037 = vmatprep.mubr.f32.mxu0 %v512
        %1038 = vmatmul.mubr.f32.gmra.mxu0 %v511
        %v1039 = vpop.f32.mrf.mxu0
        %v1040 = vadd.f32 0.0, %v1039
        %v1041 = vpop.f32.mrf.mxu0
        %1042 = vmatprep.mubr.f32.mxu0 %v514
        %1043 = vmatmul.mubr.f32.gmra.mxu0 %v513
        %v1044 = vpop.f32.mrf.mxu0
        %v1045 = vadd.f32 0.0, %v1044
        %v1046 = vpop.f32.mrf.mxu0
        %1047 = vmatprep.mubr.f32.mxu0 %v516
        %1048 = vmatmul.mubr.f32.gmra.mxu0 %v515
        %v1049 = vpop.f32.mrf.mxu0
        %v1050 = vadd.f32 0.0, %v1049
        %v1051 = vpop.f32.mrf.mxu0
        %1052 = vmatprep.mubr.f32.mxu0 %v518
        %1053 = vmatmul.mubr.f32.gmra.mxu0 %v517
        %v1054 = vpop.f32.mrf.mxu0
        %v1055 = vadd.f32 0.0, %v1054
        %v1056 = vpop.f32.mrf.mxu0
        %1057 = vmatprep.mubr.f32.mxu0 %v520
        %1058 = vmatmul.mubr.f32.gmra.mxu0 %v519
        %v1059 = vpop.f32.mrf.mxu0
        %v1060 = vadd.f32 0.0, %v1059
        %v1061 = vpop.f32.mrf.mxu0
        %1062 = vmatprep.mubr.f32.mxu0 %v522
        %1063 = vmatmul.mubr.f32.gmra.mxu0 %v521
        %v1064 = vpop.f32.mrf.mxu0
        %v1065 = vadd.f32 0.0, %v1064
        %v1066 = vpop.f32.mrf.mxu0
        %1067 = vmatprep.mubr.f32.mxu0 %v524
        %1068 = vmatmul.mubr.f32.gmra.mxu0 %v523
        %v1069 = vpop.f32.mrf.mxu0
        %v1070 = vadd.f32 0.0, %v1069
        %v1071 = vpop.f32.mrf.mxu0
        %1072 = vmatprep.mubr.f32.mxu0 %v526
        %1073 = vmatmul.mubr.f32.gmra.mxu0 %v525
        %v1074 = vpop.f32.mrf.mxu0
        %v1075 = vadd.f32 0.0, %v1074
        %v1076 = vpop.f32.mrf.mxu0
        %1077 = vmatprep.mubr.f32.mxu0 %v528
        %1078 = vmatmul.mubr.f32.gmra.mxu0 %v527
        %v1079 = vpop.f32.mrf.mxu0
        %v1080 = vadd.f32 0.0, %v1079
        %v1081 = vpop.f32.mrf.mxu0
        %1082 = vmatprep.mubr.f32.mxu0 %v530
        %1083 = vmatmul.mubr.f32.gmra.mxu0 %v529
        %v1084 = vpop.f32.mrf.mxu0
        %v1085 = vadd.f32 0.0, %v1084
        %v1086 = vpop.f32.mrf.mxu0
        %1087 = vmatprep.mubr.f32.mxu0 %v532
        %1088 = vmatmul.mubr.f32.gmra.mxu0 %v531
        %v1089 = vpop.f32.mrf.mxu0
        %v1090 = vadd.f32 0.0, %v1089
        %v1091 = vpop.f32.mrf.mxu0
        %1092 = vmatprep.mubr.f32.mxu0 %v534
        %1093 = vmatmul.mubr.f32.gmra.mxu0 %v533
        %v1094 = vpop.f32.mrf.mxu0
        %v1095 = vadd.f32 0.0, %v1094
        %v1096 = vpop.f32.mrf.mxu0
        %1097 = vmatprep.mubr.f32.mxu0 %v536
        %1098 = vmatmul.mubr.f32.gmra.mxu0 %v535
        %v1099 = vpop.f32.mrf.mxu0
        %v1100 = vadd.f32 0.0, %v1099
        %v1101 = vpop.f32.mrf.mxu0
        %1102 = vmatprep.mubr.f32.mxu0 %v538
        %1103 = vmatmul.mubr.f32.gmra.mxu0 %v537
        %v1104 = vpop.f32.mrf.mxu0
        %v1105 = vadd.f32 0.0, %v1104
        %v1106 = vpop.f32.mrf.mxu0
        %1107 = vmatprep.mubr.f32.mxu0 %v540
        %1108 = vmatmul.mubr.f32.gmra.mxu0 %v539
        %v1109 = vpop.f32.mrf.mxu0
        %v1110 = vadd.f32 0.0, %v1109
        %v1111 = vpop.f32.mrf.mxu0
        %1112 = vmatprep.mubr.f32.mxu0 %v542
        %1113 = vmatmul.mubr.f32.gmra.mxu0 %v541
        %v1114 = vpop.f32.mrf.mxu0
        %v1115 = vadd.f32 0.0, %v1114
        %v1116 = vpop.f32.mrf.mxu0
        %1117 = vmatprep.mubr.f32.mxu0 %v544
        %1118 = vmatmul.mubr.f32.gmra.mxu0 %v543
        %v1119 = vpop.f32.mrf.mxu0
        %v1120 = vadd.f32 0.0, %v1119
        %v1121 = vpop.f32.mrf.mxu0
        %1122 = vdwg.mxu0
        %v1123 = vadd.f32 %v385, %v708
        %v1124 = vadd.f32 %v386, %v710
        %v1125 = vadd.f32 %v387, %v965
        %v1126 = vadd.f32 %v388, %v714
        %v1127 = vadd.f32 %v389, %v716
        %v1128 = vadd.f32 %v390, %v970
        %v1129 = vadd.f32 %v391, %v720
        %v1130 = vadd.f32 %v392, %v722
        %v1131 = vadd.f32 %v393, %v975
        %v1132 = vadd.f32 %v394, %v726
        %v1133 = vadd.f32 %v395, %v728
        %v1134 = vadd.f32 %v396, %v980
        %v1135 = vadd.f32 %v397, %v732
        %v1136 = vadd.f32 %v398, %v734
        %v1137 = vadd.f32 %v399, %v985
        %v1138 = vadd.f32 %v400, %v738
        %v1139 = vadd.f32 %v401, %v740
        %v1140 = vadd.f32 %v402, %v990
        %v1141 = vadd.f32 %v403, %v744
        %v1142 = vadd.f32 %v404, %v746
        %v1143 = vadd.f32 %v405, %v995
        %v1144 = vadd.f32 %v406, %v750
        %v1145 = vadd.f32 %v407, %v752
        %v1146 = vadd.f32 %v408, %v1000
        %v1147 = vadd.f32 %v409, %v756
        %v1148 = vadd.f32 %v410, %v758
        %v1149 = vadd.f32 %v411, %v1005
        %v1150 = vadd.f32 %v412, %v762
        %v1151 = vadd.f32 %v413, %v764
        %v1152 = vadd.f32 %v414, %v1010
        %v1153 = vadd.f32 %v415, %v768
        %v1154 = vadd.f32 %v416, %v770
        %v1155 = vadd.f32 %v417, %v1015
        %v1156 = vadd.f32 %v418, %v774
        %v1157 = vadd.f32 %v419, %v776
        %v1158 = vadd.f32 %v420, %v1020
        %v1159 = vadd.f32 %v421, %v780
        %v1160 = vadd.f32 %v422, %v782
        %v1161 = vadd.f32 %v423, %v1025
        %v1162 = vadd.f32 %v424, %v786
        %v1163 = vadd.f32 %v425, %v788
        %v1164 = vadd.f32 %v426, %v1030
        %v1165 = vadd.f32 %v427, %v792
        %v1166 = vadd.f32 %v428, %v794
        %v1167 = vadd.f32 %v429, %v1035
        %v1168 = vadd.f32 %v430, %v798
        %v1169 = vadd.f32 %v431, %v800
        %v1170 = vadd.f32 %v432, %v1040
        %v1171 = vadd.f32 %v433, %v804
        %v1172 = vadd.f32 %v434, %v806
        %v1173 = vadd.f32 %v435, %v1045
        %v1174 = vadd.f32 %v436, %v810
        %v1175 = vadd.f32 %v437, %v812
        %v1176 = vadd.f32 %v438, %v1050
        %v1177 = vadd.f32 %v439, %v816
        %v1178 = vadd.f32 %v440, %v818
        %v1179 = vadd.f32 %v441, %v1055
        %v1180 = vadd.f32 %v442, %v822
        %v1181 = vadd.f32 %v443, %v824
        %v1182 = vadd.f32 %v444, %v1060
        %v1183 = vadd.f32 %v445, %v828
        %v1184 = vadd.f32 %v446, %v830
        %v1185 = vadd.f32 %v447, %v1065
        %v1186 = vadd.f32 %v448, %v834
        %v1187 = vadd.f32 %v449, %v836
        %v1188 = vadd.f32 %v450, %v1070
        %v1189 = vadd.f32 %v451, %v840
        %v1190 = vadd.f32 %v452, %v842
        %v1191 = vadd.f32 %v453, %v1075
        %v1192 = vadd.f32 %v454, %v846
        %v1193 = vadd.f32 %v455, %v848
        %v1194 = vadd.f32 %v456, %v1080
        %v1195 = vadd.f32 %v457, %v852
        %v1196 = vadd.f32 %v458, %v854
        %v1197 = vadd.f32 %v459, %v1085
        %v1198 = vadd.f32 %v460, %v858
        %v1199 = vadd.f32 %v461, %v860
        %v1200 = vadd.f32 %v462, %v1090
        %v1201 = vadd.f32 %v463, %v864
        %v1202 = vadd.f32 %v464, %v866
        %v1203 = vadd.f32 %v465, %v1095
        %v1204 = vadd.f32 %v466, %v870
        %v1205 = vadd.f32 %v467, %v872
        %v1206 = vadd.f32 %v468, %v1100
        %v1207 = vadd.f32 %v469, %v876
        %v1208 = vadd.f32 %v470, %v878
        %v1209 = vadd.f32 %v471, %v1105
        %v1210 = vadd.f32 %v472, %v882
        %v1211 = vadd.f32 %v473, %v884
        %v1212 = vadd.f32 %v474, %v1110
        %v1213 = vadd.f32 %v475, %v888
        %v1214 = vadd.f32 %v476, %v890
        %v1215 = vadd.f32 %v477, %v1115
        %v1216 = vadd.f32 %v478, %v894
        %v1217 = vadd.f32 %v479, %v896
        %v1218 = vadd.f32 %v480, %v1120
        %1219 = vst [vmem:[#allocation2] sm:$0xff] %v1123
        %1220 = vst [vmem:[#allocation2 + $0x8] sm:$0xff] %v1124
        %1221 = vst [vmem:[#allocation2 + $0x10] sm:$0xff] %v1125
        %1222 = vst [vmem:[#allocation2 + $0x18] sm:$0xff] %v1126
        %1223 = vst [vmem:[#allocation2 + $0x20] sm:$0xff] %v1127
        %1224 = vst [vmem:[#allocation2 + $0x28] sm:$0xff] %v1128
        %1225 = vst [vmem:[#allocation2 + $0x30] sm:$0xff] %v1129
        %1226 = vst [vmem:[#allocation2 + $0x38] sm:$0xff] %v1130
        %1227 = vst [vmem:[#allocation2 + $0x40] sm:$0xff] %v1131
        %1228 = vst [vmem:[#allocation2 + $0x48] sm:$0xff] %v1132
        %1229 = vst [vmem:[#allocation2 + $0x50] sm:$0xff] %v1133
        %1230 = vst [vmem:[#allocation2 + $0x58] sm:$0xff] %v1134
        %1231 = vst [vmem:[#allocation2 + $0x60] sm:$0xff] %v1135
        %1232 = vst [vmem:[#allocation2 + $0x68] sm:$0xff] %v1136
        %1233 = vst [vmem:[#allocation2 + $0x70] sm:$0xff] %v1137
        %1234 = vst [vmem:[#allocation2 + $0x78] sm:$0xff] %v1138
        %1235 = vst [vmem:[#allocation2 + $0x80] sm:$0xff] %v1139
        %1236 = vst [vmem:[#allocation2 + $0x88] sm:$0xff] %v1140
        %1237 = vst [vmem:[#allocation2 + $0x90] sm:$0xff] %v1141
        %1238 = vst [vmem:[#allocation2 + $0x98] sm:$0xff] %v1142
        %1239 = vst [vmem:[#allocation2 + $0xa0] sm:$0xff] %v1143
        %1240 = vst [vmem:[#allocation2 + $0xa8] sm:$0xff] %v1144
        %1241 = vst [vmem:[#allocation2 + $0xb0] sm:$0xff] %v1145
        %1242 = vst [vmem:[#allocation2 + $0xb8] sm:$0xff] %v1146
        %1243 = vst [vmem:[#allocation2 + $0xc0] sm:$0xff] %v1147
        %1244 = vst [vmem:[#allocation2 + $0xc8] sm:$0xff] %v1148
        %1245 = vst [vmem:[#allocation2 + $0xd0] sm:$0xff] %v1149
        %1246 = vst [vmem:[#allocation2 + $0xd8] sm:$0xff] %v1150
        %1247 = vst [vmem:[#allocation2 + $0xe0] sm:$0xff] %v1151
        %1248 = vst [vmem:[#allocation2 + $0xe8] sm:$0xff] %v1152
        %1249 = vst [vmem:[#allocation2 + $0xf0] sm:$0xff] %v1153
        %1250 = vst [vmem:[#allocation2 + $0xf8] sm:$0xff] %v1154
        %1251 = vst [vmem:[#allocation2 + $0x100] sm:$0xff] %v1155
        %1252 = vst [vmem:[#allocation2 + $0x108] sm:$0xff] %v1156
        %1253 = vst [vmem:[#allocation2 + $0x110] sm:$0xff] %v1157
        %1254 = vst [vmem:[#allocation2 + $0x118] sm:$0xff] %v1158
        %1255 = vst [vmem:[#allocation2 + $0x120] sm:$0xff] %v1159
        %1256 = vst [vmem:[#allocation2 + $0x128] sm:$0xff] %v1160
        %1257 = vst [vmem:[#allocation2 + $0x130] sm:$0xff] %v1161
        %1258 = vst [vmem:[#allocation2 + $0x138] sm:$0xff] %v1162
        %1259 = vst [vmem:[#allocation2 + $0x140] sm:$0xff] %v1163
        %1260 = vst [vmem:[#allocation2 + $0x148] sm:$0xff] %v1164
        %1261 = vst [vmem:[#allocation2 + $0x150] sm:$0xff] %v1165
        %1262 = vst [vmem:[#allocation2 + $0x158] sm:$0xff] %v1166
        %1263 = vst [vmem:[#allocation2 + $0x160] sm:$0xff] %v1167
        %1264 = vst [vmem:[#allocation2 + $0x168] sm:$0xff] %v1168
        %1265 = vst [vmem:[#allocation2 + $0x170] sm:$0xff] %v1169
        %1266 = vst [vmem:[#allocation2 + $0x178] sm:$0xff] %v1170
        %1267 = vst [vmem:[#allocation2 + $0x180] sm:$0xff] %v1171
        %1268 = vst [vmem:[#allocation2 + $0x188] sm:$0xff] %v1172
        %1269 = vst [vmem:[#allocation2 + $0x190] sm:$0xff] %v1173
        %1270 = vst [vmem:[#allocation2 + $0x198] sm:$0xff] %v1174
        %1271 = vst [vmem:[#allocation2 + $0x1a0] sm:$0xff] %v1175
        %1272 = vst [vmem:[#allocation2 + $0x1a8] sm:$0xff] %v1176
        %1273 = vst [vmem:[#allocation2 + $0x1b0] sm:$0xff] %v1177
        %1274 = vst [vmem:[#allocation2 + $0x1b8] sm:$0xff] %v1178
        %1275 = vst [vmem:[#allocation2 + $0x1c0] sm:$0xff] %v1179
        %1276 = vst [vmem:[#allocation2 + $0x1c8] sm:$0xff] %v1180
        %1277 = vst [vmem:[#allocation2 + $0x1d0] sm:$0xff] %v1181
        %1278 = vst [vmem:[#allocation2 + $0x1d8] sm:$0xff] %v1182
        %1279 = vst [vmem:[#allocation2 + $0x1e0] sm:$0xff] %v1183
        %1280 = vst [vmem:[#allocation2 + $0x1e8] sm:$0xff] %v1184
        %1281 = vst [vmem:[#allocation2 + $0x1f0] sm:$0xff] %v1185
        %1282 = vst [vmem:[#allocation2 + $0x1f8] sm:$0xff] %v1186
        %1283 = vst [vmem:[#allocation2 + $0x200] sm:$0xff] %v1187
        %1284 = vst [vmem:[#allocation2 + $0x208] sm:$0xff] %v1188
        %1285 = vst [vmem:[#allocation2 + $0x210] sm:$0xff] %v1189
        %1286 = vst [vmem:[#allocation2 + $0x218] sm:$0xff] %v1190
        %1287 = vst [vmem:[#allocation2 + $0x220] sm:$0xff] %v1191
        %1288 = vst [vmem:[#allocation2 + $0x228] sm:$0xff] %v1192
        %1289 = vst [vmem:[#allocation2 + $0x230] sm:$0xff] %v1193
        %1290 = vst [vmem:[#allocation2 + $0x238] sm:$0xff] %v1194
        %1291 = vst [vmem:[#allocation2 + $0x240] sm:$0xff] %v1195
        %1292 = vst [vmem:[#allocation2 + $0x248] sm:$0xff] %v1196
        %1293 = vst [vmem:[#allocation2 + $0x250] sm:$0xff] %v1197
        %1294 = vst [vmem:[#allocation2 + $0x258] sm:$0xff] %v1198
        %1295 = vst [vmem:[#allocation2 + $0x260] sm:$0xff] %v1199
        %1296 = vst [vmem:[#allocation2 + $0x268] sm:$0xff] %v1200
        %1297 = vst [vmem:[#allocation2 + $0x270] sm:$0xff] %v1201
        %1298 = vst [vmem:[#allocation2 + $0x278] sm:$0xff] %v1202
        %1299 = vst [vmem:[#allocation2 + $0x280] sm:$0xff] %v1203
        %1300 = vst [vmem:[#allocation2 + $0x288] sm:$0xff] %v1204
        %1301 = vst [vmem:[#allocation2 + $0x290] sm:$0xff] %v1205
        %1302 = vst [vmem:[#allocation2 + $0x298] sm:$0xff] %v1206
        %1303 = vst [vmem:[#allocation2 + $0x2a0] sm:$0xff] %v1207
        %1304 = vst [vmem:[#allocation2 + $0x2a8] sm:$0xff] %v1208
        %1305 = vst [vmem:[#allocation2 + $0x2b0] sm:$0xff] %v1209
        %1306 = vst [vmem:[#allocation2 + $0x2b8] sm:$0xff] %v1210
        %1307 = vst [vmem:[#allocation2 + $0x2c0] sm:$0xff] %v1211
        %1308 = vst [vmem:[#allocation2 + $0x2c8] sm:$0xff] %v1212
        %1309 = vst [vmem:[#allocation2 + $0x2d0] sm:$0xff] %v1213
        %1310 = vst [vmem:[#allocation2 + $0x2d8] sm:$0xff] %v1214
        %1311 = vst [vmem:[#allocation2 + $0x2e0] sm:$0xff] %v1215
        %1312 = vst [vmem:[#allocation2 + $0x2e8] sm:$0xff] %v1216
        %1313 = vst [vmem:[#allocation2 + $0x2f0] sm:$0xff] %v1217
        %1314 = vst [vmem:[#allocation2 + $0x2f8] sm:$0xff] %v1218
        // Predicated region
        $region49: #{tpu_custom_call.1} parent=31 // pred_check
          %p1315 = pneg %p285
        $region50: #{tpu_custom_call.1} parent=31 // pred_check_branch
          %1317 = sbr.rel (%p1315) target = $region52
        $region51: #{tpu_custom_call.1} parent=31 // pred_region
          %v1318 = vld [vmem:[#allocation2] sm:$0xff]
          %v1319 = vld [vmem:[#allocation2 + $0x8] sm:$0xff]
          %v1320 = vld [vmem:[#allocation2 + $0x10] sm:$0xff]
          %v1321 = vld [vmem:[#allocation2 + $0x18] sm:$0xff]
          %v1322 = vld [vmem:[#allocation2 + $0x20] sm:$0xff]
          %v1323 = vld [vmem:[#allocation2 + $0x28] sm:$0xff]
          %v1324 = vld [vmem:[#allocation2 + $0x30] sm:$0xff]
          %v1325 = vld [vmem:[#allocation2 + $0x38] sm:$0xff]
          %v1326 = vld [vmem:[#allocation2 + $0x40] sm:$0xff]
          %v1327 = vld [vmem:[#allocation2 + $0x48] sm:$0xff]
          %v1328 = vld [vmem:[#allocation2 + $0x50] sm:$0xff]
          %v1329 = vld [vmem:[#allocation2 + $0x58] sm:$0xff]
          %v1330 = vld [vmem:[#allocation2 + $0x60] sm:$0xff]
          %v1331 = vld [vmem:[#allocation2 + $0x68] sm:$0xff]
          %v1332 = vld [vmem:[#allocation2 + $0x70] sm:$0xff]
          %v1333 = vld [vmem:[#allocation2 + $0x78] sm:$0xff]
          %v1334 = vld [vmem:[#allocation2 + $0x80] sm:$0xff]
          %v1335 = vld [vmem:[#allocation2 + $0x88] sm:$0xff]
          %v1336 = vld [vmem:[#allocation2 + $0x90] sm:$0xff]
          %v1337 = vld [vmem:[#allocation2 + $0x98] sm:$0xff]
          %v1338 = vld [vmem:[#allocation2 + $0xa0] sm:$0xff]
          %v1339 = vld [vmem:[#allocation2 + $0xa8] sm:$0xff]
          %v1340 = vld [vmem:[#allocation2 + $0xb0] sm:$0xff]
          %v1341 = vld [vmem:[#allocation2 + $0xb8] sm:$0xff]
          %v1342 = vld [vmem:[#allocation2 + $0xc0] sm:$0xff]
          %v1343 = vld [vmem:[#allocation2 + $0xc8] sm:$0xff]
          %v1344 = vld [vmem:[#allocation2 + $0xd0] sm:$0xff]
          %v1345 = vld [vmem:[#allocation2 + $0xd8] sm:$0xff]
          %v1346 = vld [vmem:[#allocation2 + $0xe0] sm:$0xff]
          %v1347 = vld [vmem:[#allocation2 + $0xe8] sm:$0xff]
          %v1348 = vld [vmem:[#allocation2 + $0xf0] sm:$0xff]
          %v1349 = vld [vmem:[#allocation2 + $0xf8] sm:$0xff]
          %v1350 = vld [vmem:[#allocation2 + $0x100] sm:$0xff]
          %v1351 = vld [vmem:[#allocation2 + $0x108] sm:$0xff]
          %v1352 = vld [vmem:[#allocation2 + $0x110] sm:$0xff]
          %v1353 = vld [vmem:[#allocation2 + $0x118] sm:$0xff]
          %v1354 = vld [vmem:[#allocation2 + $0x120] sm:$0xff]
          %v1355 = vld [vmem:[#allocation2 + $0x128] sm:$0xff]
          %v1356 = vld [vmem:[#allocation2 + $0x130] sm:$0xff]
          %v1357 = vld [vmem:[#allocation2 + $0x138] sm:$0xff]
          %v1358 = vld [vmem:[#allocation2 + $0x140] sm:$0xff]
          %v1359 = vld [vmem:[#allocation2 + $0x148] sm:$0xff]
          %v1360 = vld [vmem:[#allocation2 + $0x150] sm:$0xff]
          %v1361 = vld [vmem:[#allocation2 + $0x158] sm:$0xff]
          %v1362 = vld [vmem:[#allocation2 + $0x160] sm:$0xff]
          %v1363 = vld [vmem:[#allocation2 + $0x168] sm:$0xff]
          %v1364 = vld [vmem:[#allocation2 + $0x170] sm:$0xff]
          %v1365 = vld [vmem:[#allocation2 + $0x178] sm:$0xff]
          %v1366 = vld [vmem:[#allocation2 + $0x180] sm:$0xff]
          %v1367 = vld [vmem:[#allocation2 + $0x188] sm:$0xff]
          %v1368 = vld [vmem:[#allocation2 + $0x190] sm:$0xff]
          %v1369 = vld [vmem:[#allocation2 + $0x198] sm:$0xff]
          %v1370 = vld [vmem:[#allocation2 + $0x1a0] sm:$0xff]
          %v1371 = vld [vmem:[#allocation2 + $0x1a8] sm:$0xff]
          %v1372 = vld [vmem:[#allocation2 + $0x1b0] sm:$0xff]
          %v1373 = vld [vmem:[#allocation2 + $0x1b8] sm:$0xff]
          %v1374 = vld [vmem:[#allocation2 + $0x1c0] sm:$0xff]
          %v1375 = vld [vmem:[#allocation2 + $0x1c8] sm:$0xff]
          %v1376 = vld [vmem:[#allocation2 + $0x1d0] sm:$0xff]
          %v1377 = vld [vmem:[#allocation2 + $0x1d8] sm:$0xff]
          %v1378 = vld [vmem:[#allocation2 + $0x1e0] sm:$0xff]
          %v1379 = vld [vmem:[#allocation2 + $0x1e8] sm:$0xff]
          %v1380 = vld [vmem:[#allocation2 + $0x1f0] sm:$0xff]
          %v1381 = vld [vmem:[#allocation2 + $0x1f8] sm:$0xff]
          %v1382 = vld [vmem:[#allocation2 + $0x200] sm:$0xff]
          %v1383 = vld [vmem:[#allocation2 + $0x208] sm:$0xff]
          %v1384 = vld [vmem:[#allocation2 + $0x210] sm:$0xff]
          %v1385 = vld [vmem:[#allocation2 + $0x218] sm:$0xff]
          %v1386 = vld [vmem:[#allocation2 + $0x220] sm:$0xff]
          %v1387 = vld [vmem:[#allocation2 + $0x228] sm:$0xff]
          %v1388 = vld [vmem:[#allocation2 + $0x230] sm:$0xff]
          %v1389 = vld [vmem:[#allocation2 + $0x238] sm:$0xff]
          %v1390 = vld [vmem:[#allocation2 + $0x240] sm:$0xff]
          %v1391 = vld [vmem:[#allocation2 + $0x248] sm:$0xff]
          %v1392 = vld [vmem:[#allocation2 + $0x250] sm:$0xff]
          %v1393 = vld [vmem:[#allocation2 + $0x258] sm:$0xff]
          %v1394 = vld [vmem:[#allocation2 + $0x260] sm:$0xff]
          %v1395 = vld [vmem:[#allocation2 + $0x268] sm:$0xff]
          %v1396 = vld [vmem:[#allocation2 + $0x270] sm:$0xff]
          %v1397 = vld [vmem:[#allocation2 + $0x278] sm:$0xff]
          %v1398 = vld [vmem:[#allocation2 + $0x280] sm:$0xff]
          %v1399 = vld [vmem:[#allocation2 + $0x288] sm:$0xff]
          %v1400 = vld [vmem:[#allocation2 + $0x290] sm:$0xff]
          %v1401 = vld [vmem:[#allocation2 + $0x298] sm:$0xff]
          %v1402 = vld [vmem:[#allocation2 + $0x2a0] sm:$0xff]
          %v1403 = vld [vmem:[#allocation2 + $0x2a8] sm:$0xff]
          %v1404 = vld [vmem:[#allocation2 + $0x2b0] sm:$0xff]
          %v1405 = vld [vmem:[#allocation2 + $0x2b8] sm:$0xff]
          %v1406 = vld [vmem:[#allocation2 + $0x2c0] sm:$0xff]
          %v1407 = vld [vmem:[#allocation2 + $0x2c8] sm:$0xff]
          %v1408 = vld [vmem:[#allocation2 + $0x2d0] sm:$0xff]
          %v1409 = vld [vmem:[#allocation2 + $0x2d8] sm:$0xff]
          %v1410 = vld [vmem:[#allocation2 + $0x2e0] sm:$0xff]
          %v1411 = vld [vmem:[#allocation2 + $0x2e8] sm:$0xff]
          %v1412 = vld [vmem:[#allocation2 + $0x2f0] sm:$0xff]
          %v1413 = vld [vmem:[#allocation2 + $0x2f8] sm:$0xff]
          %v1414 = vld [vmem:[%s250] sm:$0x7]
          %v1416 = vlaneseq
          %v1417 = vshrl.u32 %v1416, 7
          %v1418 = vsub.s32 0, %v1417
          %v1419 = vrot.slane %v1414, %v1418
          %v1420 = vlaneseq
          %v1421 = vshrl.u32 %v1420, 7
          %v1422 = vsub.s32 1, %v1421
          %v1423 = vrot.slane %v1414, %v1422
          %v1424 = vlaneseq
          %v1425 = vshrl.u32 %v1424, 7
          %v1426 = vsub.s32 2, %v1425
          %v1427 = vrot.slane %v1414, %v1426
          %v1431 = vadd.f32 %v1318, %v1419
          %v1432 = vadd.f32 %v1319, %v1423
          %v1433 = vadd.f32 %v1320, %v1427
          %v1434 = vadd.f32 %v1321, %v1419
          %v1435 = vadd.f32 %v1322, %v1423
          %v1436 = vadd.f32 %v1323, %v1427
          %v1437 = vadd.f32 %v1324, %v1419
          %v1438 = vadd.f32 %v1325, %v1423
          %v1439 = vadd.f32 %v1326, %v1427
          %v1440 = vadd.f32 %v1327, %v1419
          %v1441 = vadd.f32 %v1328, %v1423
          %v1442 = vadd.f32 %v1329, %v1427
          %v1443 = vadd.f32 %v1330, %v1419
          %v1444 = vadd.f32 %v1331, %v1423
          %v1445 = vadd.f32 %v1332, %v1427
          %v1446 = vadd.f32 %v1333, %v1419
          %v1447 = vadd.f32 %v1334, %v1423
          %v1448 = vadd.f32 %v1335, %v1427
          %v1449 = vadd.f32 %v1336, %v1419
          %v1450 = vadd.f32 %v1337, %v1423
          %v1451 = vadd.f32 %v1338, %v1427
          %v1452 = vadd.f32 %v1339, %v1419
          %v1453 = vadd.f32 %v1340, %v1423
          %v1454 = vadd.f32 %v1341, %v1427
          %v1455 = vadd.f32 %v1342, %v1419
          %v1456 = vadd.f32 %v1343, %v1423
          %v1457 = vadd.f32 %v1344, %v1427
          %v1458 = vadd.f32 %v1345, %v1419
          %v1459 = vadd.f32 %v1346, %v1423
          %v1460 = vadd.f32 %v1347, %v1427
          %v1461 = vadd.f32 %v1348, %v1419
          %v1462 = vadd.f32 %v1349, %v1423
          %v1463 = vadd.f32 %v1350, %v1427
          %v1464 = vadd.f32 %v1351, %v1419
          %v1465 = vadd.f32 %v1352, %v1423
          %v1466 = vadd.f32 %v1353, %v1427
          %v1467 = vadd.f32 %v1354, %v1419
          %v1468 = vadd.f32 %v1355, %v1423
          %v1469 = vadd.f32 %v1356, %v1427
          %v1470 = vadd.f32 %v1357, %v1419
          %v1471 = vadd.f32 %v1358, %v1423
          %v1472 = vadd.f32 %v1359, %v1427
          %v1473 = vadd.f32 %v1360, %v1419
          %v1474 = vadd.f32 %v1361, %v1423
          %v1475 = vadd.f32 %v1362, %v1427
          %v1476 = vadd.f32 %v1363, %v1419
          %v1477 = vadd.f32 %v1364, %v1423
          %v1478 = vadd.f32 %v1365, %v1427
          %v1479 = vadd.f32 %v1366, %v1419
          %v1480 = vadd.f32 %v1367, %v1423
          %v1481 = vadd.f32 %v1368, %v1427
          %v1482 = vadd.f32 %v1369, %v1419
          %v1483 = vadd.f32 %v1370, %v1423
          %v1484 = vadd.f32 %v1371, %v1427
          %v1485 = vadd.f32 %v1372, %v1419
          %v1486 = vadd.f32 %v1373, %v1423
          %v1487 = vadd.f32 %v1374, %v1427
          %v1488 = vadd.f32 %v1375, %v1419
          %v1489 = vadd.f32 %v1376, %v1423
          %v1490 = vadd.f32 %v1377, %v1427
          %v1491 = vadd.f32 %v1378, %v1419
          %v1492 = vadd.f32 %v1379, %v1423
          %v1493 = vadd.f32 %v1380, %v1427
          %v1494 = vadd.f32 %v1381, %v1419
          %v1495 = vadd.f32 %v1382, %v1423
          %v1496 = vadd.f32 %v1383, %v1427
          %v1497 = vadd.f32 %v1384, %v1419
          %v1498 = vadd.f32 %v1385, %v1423
          %v1499 = vadd.f32 %v1386, %v1427
          %v1500 = vadd.f32 %v1387, %v1419
          %v1501 = vadd.f32 %v1388, %v1423
          %v1502 = vadd.f32 %v1389, %v1427
          %v1503 = vadd.f32 %v1390, %v1419
          %v1504 = vadd.f32 %v1391, %v1423
          %v1505 = vadd.f32 %v1392, %v1427
          %v1506 = vadd.f32 %v1393, %v1419
          %v1507 = vadd.f32 %v1394, %v1423
          %v1508 = vadd.f32 %v1395, %v1427
          %v1509 = vadd.f32 %v1396, %v1419
          %v1510 = vadd.f32 %v1397, %v1423
          %v1511 = vadd.f32 %v1398, %v1427
          %v1512 = vadd.f32 %v1399, %v1419
          %v1513 = vadd.f32 %v1400, %v1423
          %v1514 = vadd.f32 %v1401, %v1427
          %v1515 = vadd.f32 %v1402, %v1419
          %v1516 = vadd.f32 %v1403, %v1423
          %v1517 = vadd.f32 %v1404, %v1427
          %v1518 = vadd.f32 %v1405, %v1419
          %v1519 = vadd.f32 %v1406, %v1423
          %v1520 = vadd.f32 %v1407, %v1427
          %v1521 = vadd.f32 %v1408, %v1419
          %v1522 = vadd.f32 %v1409, %v1423
          %v1523 = vadd.f32 %v1410, %v1427
          %v1524 = vadd.f32 %v1411, %v1419
          %v1525 = vadd.f32 %v1412, %v1423
          %v1526 = vadd.f32 %v1413, %v1427
          %1527 = vst [vmem:[%s277] sm:$0xff] %v1431
          %1528 = vst [vmem:[%s277 + $0x8] sm:$0xff] %v1432
          %1529 = vst [vmem:[%s277 + $0x10] sm:$0xff] %v1433
          %1530 = vst [vmem:[%s277 + $0x18] sm:$0xff] %v1434
          %1531 = vst [vmem:[%s277 + $0x20] sm:$0xff] %v1435
          %1532 = vst [vmem:[%s277 + $0x28] sm:$0xff] %v1436
          %1533 = vst [vmem:[%s277 + $0x30] sm:$0xff] %v1437
          %1534 = vst [vmem:[%s277 + $0x38] sm:$0xff] %v1438
          %1535 = vst [vmem:[%s277 + $0x40] sm:$0xff] %v1439
          %1536 = vst [vmem:[%s277 + $0x48] sm:$0xff] %v1440
          %1537 = vst [vmem:[%s277 + $0x50] sm:$0xff] %v1441
          %1538 = vst [vmem:[%s277 + $0x58] sm:$0xff] %v1442
          %1539 = vst [vmem:[%s277 + $0x60] sm:$0xff] %v1443
          %1540 = vst [vmem:[%s277 + $0x68] sm:$0xff] %v1444
          %1541 = vst [vmem:[%s277 + $0x70] sm:$0xff] %v1445
          %1542 = vst [vmem:[%s277 + $0x78] sm:$0xff] %v1446
          %1543 = vst [vmem:[%s277 + $0x80] sm:$0xff] %v1447
          %1544 = vst [vmem:[%s277 + $0x88] sm:$0xff] %v1448
          %1545 = vst [vmem:[%s277 + $0x90] sm:$0xff] %v1449
          %1546 = vst [vmem:[%s277 + $0x98] sm:$0xff] %v1450
          %1547 = vst [vmem:[%s277 + $0xa0] sm:$0xff] %v1451
          %1548 = vst [vmem:[%s277 + $0xa8] sm:$0xff] %v1452
          %1549 = vst [vmem:[%s277 + $0xb0] sm:$0xff] %v1453
          %1550 = vst [vmem:[%s277 + $0xb8] sm:$0xff] %v1454
          %1551 = vst [vmem:[%s277 + $0xc0] sm:$0xff] %v1455
          %1552 = vst [vmem:[%s277 + $0xc8] sm:$0xff] %v1456
          %1553 = vst [vmem:[%s277 + $0xd0] sm:$0xff] %v1457
          %1554 = vst [vmem:[%s277 + $0xd8] sm:$0xff] %v1458
          %1555 = vst [vmem:[%s277 + $0xe0] sm:$0xff] %v1459
          %1556 = vst [vmem:[%s277 + $0xe8] sm:$0xff] %v1460
          %1557 = vst [vmem:[%s277 + $0xf0] sm:$0xff] %v1461
          %1558 = vst [vmem:[%s277 + $0xf8] sm:$0xff] %v1462
          %1559 = vst [vmem:[%s277 + $0x100] sm:$0xff] %v1463
          %1560 = vst [vmem:[%s277 + $0x108] sm:$0xff] %v1464
          %1561 = vst [vmem:[%s277 + $0x110] sm:$0xff] %v1465
          %1562 = vst [vmem:[%s277 + $0x118] sm:$0xff] %v1466
          %1563 = vst [vmem:[%s277 + $0x120] sm:$0xff] %v1467
          %1564 = vst [vmem:[%s277 + $0x128] sm:$0xff] %v1468
          %1565 = vst [vmem:[%s277 + $0x130] sm:$0xff] %v1469
          %1566 = vst [vmem:[%s277 + $0x138] sm:$0xff] %v1470
          %1567 = vst [vmem:[%s277 + $0x140] sm:$0xff] %v1471
          %1568 = vst [vmem:[%s277 + $0x148] sm:$0xff] %v1472
          %1569 = vst [vmem:[%s277 + $0x150] sm:$0xff] %v1473
          %1570 = vst [vmem:[%s277 + $0x158] sm:$0xff] %v1474
          %1571 = vst [vmem:[%s277 + $0x160] sm:$0xff] %v1475
          %1572 = vst [vmem:[%s277 + $0x168] sm:$0xff] %v1476
          %1573 = vst [vmem:[%s277 + $0x170] sm:$0xff] %v1477
          %1574 = vst [vmem:[%s277 + $0x178] sm:$0xff] %v1478
          %1575 = vst [vmem:[%s277 + $0x180] sm:$0xff] %v1479
          %1576 = vst [vmem:[%s277 + $0x188] sm:$0xff] %v1480
          %1577 = vst [vmem:[%s277 + $0x190] sm:$0xff] %v1481
          %1578 = vst [vmem:[%s277 + $0x198] sm:$0xff] %v1482
          %1579 = vst [vmem:[%s277 + $0x1a0] sm:$0xff] %v1483
          %1580 = vst [vmem:[%s277 + $0x1a8] sm:$0xff] %v1484
          %1581 = vst [vmem:[%s277 + $0x1b0] sm:$0xff] %v1485
          %1582 = vst [vmem:[%s277 + $0x1b8] sm:$0xff] %v1486
          %1583 = vst [vmem:[%s277 + $0x1c0] sm:$0xff] %v1487
          %1584 = vst [vmem:[%s277 + $0x1c8] sm:$0xff] %v1488
          %1585 = vst [vmem:[%s277 + $0x1d0] sm:$0xff] %v1489
          %1586 = vst [vmem:[%s277 + $0x1d8] sm:$0xff] %v1490
          %1587 = vst [vmem:[%s277 + $0x1e0] sm:$0xff] %v1491
          %1588 = vst [vmem:[%s277 + $0x1e8] sm:$0xff] %v1492
          %1589 = vst [vmem:[%s277 + $0x1f0] sm:$0xff] %v1493
          %1590 = vst [vmem:[%s277 + $0x1f8] sm:$0xff] %v1494
          %1591 = vst [vmem:[%s277 + $0x200] sm:$0xff] %v1495
          %1592 = vst [vmem:[%s277 + $0x208] sm:$0xff] %v1496
          %1593 = vst [vmem:[%s277 + $0x210] sm:$0xff] %v1497
          %1594 = vst [vmem:[%s277 + $0x218] sm:$0xff] %v1498
          %1595 = vst [vmem:[%s277 + $0x220] sm:$0xff] %v1499
          %1596 = vst [vmem:[%s277 + $0x228] sm:$0xff] %v1500
          %1597 = vst [vmem:[%s277 + $0x230] sm:$0xff] %v1501
          %1598 = vst [vmem:[%s277 + $0x238] sm:$0xff] %v1502
          %1599 = vst [vmem:[%s277 + $0x240] sm:$0xff] %v1503
          %1600 = vst [vmem:[%s277 + $0x248] sm:$0xff] %v1504
          %1601 = vst [vmem:[%s277 + $0x250] sm:$0xff] %v1505
          %1602 = vst [vmem:[%s277 + $0x258] sm:$0xff] %v1506
          %1603 = vst [vmem:[%s277 + $0x260] sm:$0xff] %v1507
          %1604 = vst [vmem:[%s277 + $0x268] sm:$0xff] %v1508
          %1605 = vst [vmem:[%s277 + $0x270] sm:$0xff] %v1509
          %1606 = vst [vmem:[%s277 + $0x278] sm:$0xff] %v1510
          %1607 = vst [vmem:[%s277 + $0x280] sm:$0xff] %v1511
          %1608 = vst [vmem:[%s277 + $0x288] sm:$0xff] %v1512
          %1609 = vst [vmem:[%s277 + $0x290] sm:$0xff] %v1513
          %1610 = vst [vmem:[%s277 + $0x298] sm:$0xff] %v1514
          %1611 = vst [vmem:[%s277 + $0x2a0] sm:$0xff] %v1515
          %1612 = vst [vmem:[%s277 + $0x2a8] sm:$0xff] %v1516
          %1613 = vst [vmem:[%s277 + $0x2b0] sm:$0xff] %v1517
          %1614 = vst [vmem:[%s277 + $0x2b8] sm:$0xff] %v1518
          %1615 = vst [vmem:[%s277 + $0x2c0] sm:$0xff] %v1519
          %1616 = vst [vmem:[%s277 + $0x2c8] sm:$0xff] %v1520
          %1617 = vst [vmem:[%s277 + $0x2d0] sm:$0xff] %v1521
          %1618 = vst [vmem:[%s277 + $0x2d8] sm:$0xff] %v1522
          %1619 = vst [vmem:[%s277 + $0x2e0] sm:$0xff] %v1523
          %1620 = vst [vmem:[%s277 + $0x2e8] sm:$0xff] %v1524
          %1621 = vst [vmem:[%s277 + $0x2f0] sm:$0xff] %v1525
          %1622 = vst [vmem:[%s277 + $0x2f8] sm:$0xff] %v1526
        $region52: #{tpu_custom_call.1} parent=31 // pred_fallthru
          _
        %s1623 = sand.u32 %s132, 1
        %s1624 = scalar_lea.sflag [#allocation5], %s1623
        %s1625 = sand.u32 %s132, 1
        %s1626 = smul.addr %s1625, 768
        %s1627 = scalar_lea.vmem [#allocation9], %s1626
        // Predicated region
        $region53: #{tpu_custom_call.1} parent=31 // pred_check
          %p1628 = pneg %p142
        $region54: #{tpu_custom_call.1} parent=31 // pred_check_branch
          %1630 = sbr.rel (%p1628) target = $region56
        $region55: #{tpu_custom_call.1} parent=31 // pred_region
          %s1631 = smul.u32 32, %s26
          %s1632 = smul.u32 3, %s27
          %s1634 = ssub.s32 12288, 12288
          %1635 = vsyncadd %s1624, %s1634
          %s1636 = smul.addr %s1631, 6
          %s1637 = sadd.s32 %s1632, %s1636
          %s1638 = smul.addr %s1637, 128
          %s1639 = scalar_lea.hbm %s3, %s1638
          %s1640 = sshll.u32 %s1627, 4
          %s1641 = int_to_ptr.vmem [resolvable:$true] %s1640
          %1646 = dma.vmem_to_hbm [thread:$0]  %s1641, 12288, %s1639, %s1624, 384, 768, 24
        $region56: #{tpu_custom_call.1} parent=31 // pred_fallthru
          _
      $region32: #{tpu_custom_call.1} parent=5 // pred_fallthru
        _
      %p1647 = scmp.le.s32.totalorder 2, %s16
      // Predicated region
      $region57: #{tpu_custom_call.1} parent=5 // pred_check
        %p1648 = pneg %p1647
      $region58: #{tpu_custom_call.1} parent=5 // pred_check_branch
        %1650 = sbr.rel (%p1648) target = $region60
      $region59: #{tpu_custom_call.1} parent=5 // pred_region
        %s1651 = ssub.s32 %s16, 2
        // Predicated region
        $region61: #{tpu_custom_call.1} parent=59 // pred_check
          %p1652 = pneg %p148
        $region62: #{tpu_custom_call.1} parent=59 // pred_check_branch
          %1654 = sbr.rel (%p1652) target = $region64
        $region63: #{tpu_custom_call.1} parent=59 // pred_region
          %s1655 = sand.u32 %s133, 1
          %s1656 = scalar_lea.sflag [#allocation5], %s1655
          %s1657 = sand.u32 %s133, 1
          %s1658 = smul.addr %s1657, 768
          %s1659 = scalar_lea.vmem [#allocation9], %s1658
          %1660 = dma.done %s1656, 12288
        $region64: #{tpu_custom_call.1} parent=59 // pred_fallthru
          _
      $region60: #{tpu_custom_call.1} parent=5 // pred_fallthru
        _
    $region6: #{tpu_custom_call.1} parent=1 // loop_footer
      %s20 = sadd.s32 1, %s16
    $region7: #{tpu_custom_call.1} parent=1 // loop_footer_branch
      %15 = sbr.rel target = $region3
    $region8: #{tpu_custom_call.1} parent=1 // loop_exit
      _
    %1661 = vsyncpa [#allocation4], 1
    %s1662 = scalar_lea.sflag [#allocation4], 1
    %1663 = vsyncpa %s1662, 1
    %1664 = vsyncpa [#allocation7], 1
    %s1665 = scalar_lea.sflag [#allocation7], 1
    %1666 = vsyncpa %s1665, 1
    %1667 = vsyncpa [#allocation5], 1
    %s1668 = scalar_lea.sflag [#allocation5], 1
    %1669 = vsyncpa %s1668, 1

</llo_original>
